<compile_context>
chip_gen: v7x
topology: tpu7x:2x2x1
jax: 0.10.0
libtpu: 0.0.40
codegen_flags: <defaults>
</compile_context>

<pallas_src>
import math
import numpy as np
import jax
import jax.numpy as jnp
from jax.experimental import pallas as pl
from jax.experimental.pallas import tpu as pltpu

NUM_CLASSES = 7
C_PAD = 128            # class dim padded to a full lane width
FEAT_DIM = 512
KDE_BANDWIDTH = 0.2
BN_EPS = 1e-5


# ---------------------------------------------------------------------------
# Fused kernel: backbone stand-in + fc/BN + cosine matrix + KDE volumes + affinity loss.
def fused_kernel(x_ref, wft_ref, wfc_ref, gamma_ref, beta_ref, tgt_ref, out_ref):
    # ---- backbone stand-in: Flatten + Linear, bf16 operands, f32 accumulation (MXU) ----
    fea = jnp.dot(x_ref[...], wft_ref[...], preferred_element_type=jnp.float32)  # (B, D) f32
    B, D = fea.shape
    CP = out_ref.shape[1]
    fea_bf = fea.astype(jnp.bfloat16)          # single cast, reused by fc and gram matmuls

    # ---- one-hot built in-kernel from int32 targets (B,1): iota == target compare ----
    cls_iota = jax.lax.broadcasted_iota(jnp.int32, (B, CP), 1)
    onehot = (cls_iota == tgt_ref[...]).astype(jnp.float32)                      # (B, CP)

    # ---- out = BatchNorm1d(fc(fea)), training mode (batch stats, biased variance) ----
    logits = jnp.dot(fea_bf, wfc_ref[...], preferred_element_type=jnp.float32)   # (B, CP)
    mu = jnp.mean(logits, axis=0, keepdims=True)
    cen = logits - mu
    var = jnp.mean(cen * cen, axis=0, keepdims=True)
    bn = gamma_ref[...] * cen * jax.lax.rsqrt(var + BN_EPS) + beta_ref[...]      # (B, CP)

    # ---- gram (bf16 operands, f32 acc); squared norms from its diagonal, ONE reduce ----
    gram = jax.lax.dot_general(fea_bf, fea_bf, (((1,), (1,)), ((), ())),
                               preferred_element_type=jnp.float32)               # (B, B)
    rows = jax.lax.broadcasted_iota(jnp.int32, (B, B), 0)
    diag = jnp.where(rows == jax.lax.broadcasted_iota(jnp.int32, (B, B), 1), gram, 0.0)
    sq_col = jnp.sum(diag, axis=1, keepdims=True)        # (B, 1)  ||f_i||^2
    sq_row = jnp.transpose(sq_col, (1, 0))               # (1, B)  ||f_j||^2 (tiny transpose)

    # ---- cosine similarity + per-class column means ----
    cos = gram * jax.lax.rsqrt(sq_col) * jax.lax.rsqrt(sq_row)                   # (B, B)
    counts = jnp.maximum(jnp.sum(onehot, axis=0, keepdims=True), 1.0)            # (1, CP)
    cos_mean = jnp.dot(cos, onehot, preferred_element_type=jnp.float32) / counts

    # ---- vectorized per-class gaussian-KDE log-density "volume" ----
    sqd = jnp.maximum(sq_col + sq_row - 2.0 * gram, 0.0)                         # (B, B)
    h2 = KDE_BANDWIDTH * KDE_BANDWIDTH
    kexp = jnp.exp(sqd * (-0.5 / h2))                    # expo <= 0, diag term ~ 1 (safe exp)
    kde_sums = jnp.dot(kexp, onehot, preferred_element_type=jnp.float32)         # (B, CP)
    log_norm_const = 0.5 * D * math.log(2.0 * math.pi * h2)
    logp = jnp.log(jnp.maximum(kde_sums, 1e-30)) - jnp.log(counts) - log_norm_const
    # mask BEFORE summing: non-member / padded columns must not contribute
    vol = jnp.sum(jnp.where(onehot > 0.5, logp, 0.0), axis=0, keepdims=True)     # (1, CP)
    weight = 1.0 / (vol + 1e-5)                          # exact divide (feeds the loss)

    # ---- affinity loss (padded columns contribute exactly zero to both sums) ----
    s1 = jnp.sum(cos_mean * onehot * weight)             # sum of similarity1 over classes
    s2 = jnp.sum(cos_mean * (1.0 - onehot) * weight)     # (C-1) * sum of similarity2 over rows
    loss = (1.0 + s2 / ((NUM_CLASSES - 1) * B) + (1.0 - s1 / NUM_CLASSES)) / 2.0

    # ---- single lane-dense output store; loss stashed in padded lane (0, NUM_CLASSES) ----
    is_loss_lane = (jax.lax.broadcasted_iota(jnp.int32, (B, CP), 0) == 0) & \
                   (cls_iota == NUM_CLASSES)
    out_ref[...] = jnp.where(is_loss_lane, loss, bn)


def fused_forward(x_flat_bf16, w_feat_t_bf16, w_fc_t_pad_bf16, gamma_pad, beta_pad, tgt_col):
    B, K = x_flat_bf16.shape
    D = w_feat_t_bf16.shape[1]
    CP = w_fc_t_pad_bf16.shape[1]
    return pl.pallas_call(
        fused_kernel,
        out_shape=jax.ShapeDtypeStruct((B, CP), jnp.float32),
        grid_spec=pltpu.PrefetchScalarGridSpec(
            num_scalar_prefetch=0,
            grid=(1,),
            in_specs=[pl.BlockSpec((B, K), lambda i: (0, 0)),
                      pl.BlockSpec((K, D), lambda i: (0, 0)),
                      pl.BlockSpec((D, CP), lambda i: (0, 0)),
                      pl.BlockSpec((1, CP), lambda i: (0, 0)),
                      pl.BlockSpec((1, CP), lambda i: (0, 0)),
                      pl.BlockSpec((B, 1), lambda i: (0, 0))],
            out_specs=pl.BlockSpec((B, CP), lambda i: (0, 0)),
        ),
        compiler_params=pltpu.CompilerParams(dimension_semantics=("arbitrary",)),
    )(x_flat_bf16, w_feat_t_bf16, w_fc_t_pad_bf16, gamma_pad, beta_pad, tgt_col)


# ---------------------------------------------------------------------------
def prepare_params(params):
    """Pad / cast parameters once, outside the per-step jit."""
    pad = C_PAD - NUM_CLASSES
    return {
        "w_feat_t_bf16": params["w_feat_t"].astype(jnp.bfloat16),
        "w_fc_t_pad_bf16": jnp.pad(params["w_fc_t"], ((0, 0), (0, pad))).astype(jnp.bfloat16),
        "gamma_pad": jnp.pad(params["gamma"], ((0, 0), (0, pad))),
        "beta_pad": jnp.pad(params["beta"], ((0, 0), (0, pad))),
    }


@jax.jit
def _forward_device(x, targets, w_feat_bf, w_fc_pad_bf, gamma_pad, beta_pad):
    B = x.shape[0]
    x_flat = x.reshape(B, -1).astype(jnp.bfloat16)       # Flatten + bf16 MXU operand
    tgt_col = targets.reshape(B, 1).astype(jnp.int32)
    out_p = fused_forward(x_flat, w_feat_bf, w_fc_pad_bf, gamma_pad, beta_pad, tgt_col)
    return out_p[:, :NUM_CLASSES], out_p[0, NUM_CLASSES]


def model_forward(x, targets, prepped, mode="train", task="source"):
    """Mirrors Model.forward for mode='train', task='source'."""
    out, loss = _forward_device(x, targets, prepped["w_feat_t_bf16"],
                                prepped["w_fc_t_pad_bf16"],
                                prepped["gamma_pad"], prepped["beta_pad"])
    if mode != "train":
        # TODO(synk): eval path (running-stat BN, returning fea) not implemented.
        return out, None
    # host-side class-count check, same as `len(set(targets.cpu().numpy()))`
    c_num = len(set(np.asarray(targets).tolist()))
    if c_num < NUM_CLASSES:
        return [out]
    return [out, loss]


# ---------------------------------------------------------------------------
def reference_forward(x, targets, params):
    """Pure-JAX (f32, HIGHEST) reference of the same math, for validation."""
    hi = jax.lax.Precision.HIGHEST
    x_flat = x.reshape(x.shape[0], -1).astype(jnp.float32)
    fea = jnp.dot(x_flat, params["w_feat_t"], precision=hi)
    logits = jnp.dot(fea, params["w_fc_t"], precision=hi)
    mu = logits.mean(0, keepdims=True)
    var = ((logits - mu) ** 2).mean(0, keepdims=True)
    out = params["gamma"] * (logits - mu) / jnp.sqrt(var + BN_EPS) + params["beta"]

    onehot = jax.nn.one_hot(targets, NUM_CLASSES, dtype=jnp.float32)
    gram = jnp.dot(fea, fea.T, precision=hi)
    sq = jnp.sum(fea * fea, axis=1, keepdims=True)
    cos = gram / (jnp.sqrt(sq) * jnp.sqrt(sq).T)
    counts = onehot.sum(0, keepdims=True)
    cos_mean = jnp.dot(cos, onehot, precision=hi) / counts
    sqd = jnp.maximum(sq + sq.T - 2.0 * gram, 0.0)
    h2 = KDE_BANDWIDTH ** 2
    expo = -sqd / (2.0 * h2)
    const = 0.5 * fea.shape[1] * math.log(2.0 * math.pi * h2)
    B, C = onehot.shape
    vols = []
    for c in range(C):
        mask = onehot[:, c] > 0.5
        masked = jnp.where(mask[None, :], expo, -1e30)
        lse = jax.scipy.special.logsumexp(masked, axis=1)
        logp = lse - jnp.log(counts[0, c]) - const
        vols.append(jnp.sum(jnp.where(mask, logp, 0.0)))
    volume = jnp.stack(vols)
    weight = 1.0 / (volume + 1e-5)
    w = jnp.broadcast_to(weight[None, :], (B, C))
    sim1 = jnp.sum(cos_mean * onehot * w, axis=0)
    sim2 = jnp.sum(cos_mean * (1.0 - onehot) * w, axis=1) / (C - 1)
    loss = (1.0 + sim2.mean() + (1.0 - sim1.mean())) / 2.0
    return out, loss


# ---------------------------------------------------------------------------
if __name__ == "__main__":
    B, Cin, H, W = 8, 3, 16, 16          # small NCHW input; batch covers all 7 classes
    key = jax.random.PRNGKey(0)
    k_x, k_wf, k_fc = jax.random.split(key, 3)

    x = jax.random.normal(k_x, (B, Cin, H, W), dtype=jnp.float32)
    targets = jnp.array([0, 1, 2, 3, 4, 5, 6, 0], dtype=jnp.int32)

    in_dim = Cin * H * W
    params = {
        # deterministic stand-in backbone weight (Flatten + Linear(in_dim, 512))
        "w_feat_t": jax.random.normal(k_wf, (in_dim, FEAT_DIM), jnp.float32) / in_dim,
        # fc: Linear(512, num_classes, bias=False), stored transposed (D, C)
        "w_fc_t": jax.random.normal(k_fc, (FEAT_DIM, NUM_CLASSES), jnp.float32)
                  / math.sqrt(FEAT_DIM),
        # BatchNorm1d(num_classes) default init: weight=1, bias=0
        "gamma": jnp.ones((1, NUM_CLASSES), jnp.float32),
        "beta": jnp.zeros((1, NUM_CLASSES), jnp.float32),
    }
    prepped = prepare_params(params)     # padding / bf16 casts hoisted out of the step

    result = model_forward(x, targets, prepped, mode="train", task="source")
    out, affinity_loss = result[0], result[1]
    jax.block_until_ready(out)
    jax.block_until_ready(affinity_loss)

    out_ref, loss_ref = reference_forward(x, targets, params)
    np.testing.assert_allclose(np.asarray(out), np.asarray(out_ref),
                               rtol=5e-2, atol=5e-2)
    np.testing.assert_allclose(np.asarray(affinity_loss), np.asarray(loss_ref),
                               rtol=5e-2, atol=5e-2)
    assert np.isfinite(np.asarray(affinity_loss))
    print("KERNEL_OK")
</pallas_src>

<mosaic_0001>
module attributes {stable_mosaic.version = 11 : i64} {
  func.func @fused_kernel(%arg0: i32, %arg1: memref<8x768xbf16, #tpu.memory_space<vmem>>, %arg2: memref<768x512xbf16, #tpu.memory_space<vmem>>, %arg3: memref<512x128xbf16, #tpu.memory_space<vmem>>, %arg4: memref<1x128xf32, #tpu.memory_space<vmem>>, %arg5: memref<1x128xf32, #tpu.memory_space<vmem>>, %arg6: memref<8x1xi32, #tpu.memory_space<vmem>>, %arg7: memref<8x128xf32, #tpu.memory_space<vmem>>) attributes {dimension_semantics = [#tpu.dimension_semantics<arbitrary>], iteration_bounds = array<i64: 1>, scalar_prefetch = 0 : i64, scratch_operands = 0 : i64, tpu.core_type = #tpu.core_type<tc>, window_params = [{pipeline_mode = #tpu.pipeline_mode<synchronous>, transform_indices = @transform_0, window_bounds = array<i64: 8, 768>}, {pipeline_mode = #tpu.pipeline_mode<synchronous>, transform_indices = @transform_1, window_bounds = array<i64: 768, 512>}, {pipeline_mode = #tpu.pipeline_mode<synchronous>, transform_indices = @transform_2, window_bounds = array<i64: 512, 128>}, {pipeline_mode = #tpu.pipeline_mode<synchronous>, transform_indices = @transform_3, window_bounds = array<i64: 1, 128>}, {pipeline_mode = #tpu.pipeline_mode<synchronous>, transform_indices = @transform_4, window_bounds = array<i64: 1, 128>}, {pipeline_mode = #tpu.pipeline_mode<synchronous>, transform_indices = @transform_5, window_bounds = array<i64: 8, 1>}, {pipeline_mode = #tpu.pipeline_mode<synchronous>, transform_indices = @transform_6, window_bounds = array<i64: 8, 128>}]} {
    %c0 = arith.constant 0 : index
    %c0_0 = arith.constant 0 : index
    %0 = vector.load %arg1[%c0, %c0_0] : memref<8x768xbf16, #tpu.memory_space<vmem>>, vector<8x768xbf16>
    %c0_1 = arith.constant 0 : index
    %c0_2 = arith.constant 0 : index
    %1 = vector.load %arg2[%c0_1, %c0_2] : memref<768x512xbf16, #tpu.memory_space<vmem>>, vector<768x512xbf16>
    %cst = arith.constant dense<0.000000e+00> : vector<8x512xf32>
    %2 = tpu.matmul %0, %1, %cst {dimension_numbers = #tpu.dot_dimension_numbers<[1], [0], [0], [1], [0, 0, 1, 1], [], []>} : vector<8x768xbf16>, vector<768x512xbf16>, vector<8x512xf32> -> vector<8x512xf32>
    %3 = arith.truncf %2 : vector<8x512xf32> to vector<8x512xbf16>
    %4 = tpu.iota {dimensions = array<i32: 1>} : vector<8x128xi32>
    %c0_3 = arith.constant 0 : index
    %c0_4 = arith.constant 0 : index
    %5 = vector.load %arg6[%c0_3, %c0_4] : memref<8x1xi32, #tpu.memory_space<vmem>>, vector<8x1xi32>
    %6 = vector.broadcast %5 : vector<8x1xi32> to vector<8x128xi32>
    %7 = arith.cmpi eq, %4, %6 : vector<8x128xi32>
    %8 = arith.extui %7 : vector<8x128xi1> to vector<8x128xi32>
    %9 = arith.sitofp %8 : vector<8x128xi32> to vector<8x128xf32>
    %c0_5 = arith.constant 0 : index
    %c0_6 = arith.constant 0 : index
    %10 = vector.load %arg3[%c0_5, %c0_6] : memref<512x128xbf16, #tpu.memory_space<vmem>>, vector<512x128xbf16>
    %cst_7 = arith.constant dense<0.000000e+00> : vector<8x128xf32>
    %11 = tpu.matmul %3, %10, %cst_7 {dimension_numbers = #tpu.dot_dimension_numbers<[1], [0], [0], [1], [0, 0, 1, 1], [], []>} : vector<8x512xbf16>, vector<512x128xbf16>, vector<8x128xf32> -> vector<8x128xf32>
    %cst_8 = arith.constant dense<0.000000e+00> : vector<128xf32>
    %12 = vector.multi_reduction <add>, %11, %cst_8 [0] : vector<8x128xf32> to vector<128xf32>
    %13 = vector.shape_cast %12 : vector<128xf32> to vector<1x128xf32>
    %cst_9 = arith.constant 8.000000e+00 : f32
    %14 = vector.broadcast %cst_9 : f32 to vector<1x128xf32>
    %15 = arith.divf %13, %14 : vector<1x128xf32>
    %16 = vector.broadcast %15 : vector<1x128xf32> to vector<8x128xf32>
    %17 = arith.subf %11, %16 : vector<8x128xf32>
    %18 = arith.mulf %17, %17 : vector<8x128xf32>
    %cst_10 = arith.constant dense<0.000000e+00> : vector<128xf32>
    %19 = vector.multi_reduction <add>, %18, %cst_10 [0] : vector<8x128xf32> to vector<128xf32>
    %20 = vector.shape_cast %19 : vector<128xf32> to vector<1x128xf32>
    %cst_11 = arith.constant 8.000000e+00 : f32
    %21 = vector.broadcast %cst_11 : f32 to vector<1x128xf32>
    %22 = arith.divf %20, %21 : vector<1x128xf32>
    %c0_12 = arith.constant 0 : index
    %c0_13 = arith.constant 0 : index
    %23 = vector.load %arg4[%c0_12, %c0_13] : memref<1x128xf32, #tpu.memory_space<vmem>>, vector<1x128xf32>
    %24 = vector.broadcast %23 : vector<1x128xf32> to vector<8x128xf32>
    %25 = arith.mulf %24, %17 : vector<8x128xf32>
    %cst_14 = arith.constant 9.99999974E-6 : f32
    %26 = vector.broadcast %cst_14 : f32 to vector<1x128xf32>
    %27 = arith.addf %22, %26 : vector<1x128xf32>
    %28 = math.rsqrt %27 : vector<1x128xf32>
    %29 = vector.broadcast %28 : vector<1x128xf32> to vector<8x128xf32>
    %30 = arith.mulf %25, %29 : vector<8x128xf32>
    %c0_15 = arith.constant 0 : index
    %c0_16 = arith.constant 0 : index
    %31 = vector.load %arg5[%c0_15, %c0_16] : memref<1x128xf32, #tpu.memory_space<vmem>>, vector<1x128xf32>
    %32 = vector.broadcast %31 : vector<1x128xf32> to vector<8x128xf32>
    %33 = arith.addf %30, %32 : vector<8x128xf32>
    %cst_17 = arith.constant dense<0.000000e+00> : vector<8x8xf32>
    %34 = tpu.matmul %3, %3, %cst_17 {dimension_numbers = #tpu.dot_dimension_numbers<[1], [1], [0], [0], [0, 0, 1, 0], [], []>} : vector<8x512xbf16>, vector<8x512xbf16>, vector<8x8xf32> -> vector<8x8xf32>
    %35 = tpu.iota {dimensions = array<i32: 0>} : vector<8x8xi32>
    %36 = tpu.iota {dimensions = array<i32: 1>} : vector<8x8xi32>
    %37 = arith.cmpi eq, %35, %36 : vector<8x8xi32>
    %cst_18 = arith.constant 0.000000e+00 : f32
    %38 = vector.broadcast %cst_18 : f32 to vector<8x8xf32>
    %39 = arith.select %37, %34, %38 : vector<8x8xi1>, vector<8x8xf32>
    %cst_19 = arith.constant dense<0.000000e+00> : vector<8xf32>
    %40 = vector.multi_reduction <add>, %39, %cst_19 [1] : vector<8x8xf32> to vector<8xf32>
    %41 = vector.shape_cast %40 : vector<8xf32> to vector<8x1xf32>
    %42 = tpu.transpose %41, [1, 0] : vector<8x1xf32> -> vector<1x8xf32>
    %43 = math.rsqrt %41 : vector<8x1xf32>
    %44 = vector.broadcast %43 : vector<8x1xf32> to vector<8x8xf32>
    %45 = arith.mulf %34, %44 : vector<8x8xf32>
    %46 = math.rsqrt %42 : vector<1x8xf32>
    %47 = vector.broadcast %46 : vector<1x8xf32> to vector<8x8xf32>
    %48 = arith.mulf %45, %47 : vector<8x8xf32>
    %cst_20 = arith.constant dense<0.000000e+00> : vector<128xf32>
    %49 = vector.multi_reduction <add>, %9, %cst_20 [0] : vector<8x128xf32> to vector<128xf32>
    %50 = vector.shape_cast %49 : vector<128xf32> to vector<1x128xf32>
    %cst_21 = arith.constant 1.000000e+00 : f32
    %51 = vector.broadcast %cst_21 : f32 to vector<1x128xf32>
    %52 = arith.maximumf %50, %51 : vector<1x128xf32>
    %cst_22 = arith.constant dense<0.000000e+00> : vector<8x128xf32>
    %53 = tpu.matmul %48, %9, %cst_22 {dimension_numbers = #tpu.dot_dimension_numbers<[1], [0], [0], [1], [0, 0, 1, 1], [], []>} : vector<8x8xf32>, vector<8x128xf32>, vector<8x128xf32> -> vector<8x128xf32>
    %54 = vector.broadcast %52 : vector<1x128xf32> to vector<8x128xf32>
    %55 = arith.divf %53, %54 : vector<8x128xf32>
    %56 = vector.broadcast %41 : vector<8x1xf32> to vector<8x8xf32>
    %57 = vector.broadcast %42 : vector<1x8xf32> to vector<8x8xf32>
    %58 = arith.addf %56, %57 : vector<8x8xf32>
    %cst_23 = arith.constant 2.000000e+00 : f32
    %59 = vector.broadcast %cst_23 : f32 to vector<8x8xf32>
    %60 = arith.mulf %59, %34 : vector<8x8xf32>
    %61 = arith.subf %58, %60 : vector<8x8xf32>
    %cst_24 = arith.constant 0.000000e+00 : f32
    %62 = vector.broadcast %cst_24 : f32 to vector<8x8xf32>
    %63 = arith.maximumf %61, %62 : vector<8x8xf32>
    %cst_25 = arith.constant -1.250000e+01 : f32
    %64 = vector.broadcast %cst_25 : f32 to vector<8x8xf32>
    %65 = arith.mulf %63, %64 : vector<8x8xf32>
    %66 = math.exp %65 : vector<8x8xf32>
    %cst_26 = arith.constant dense<0.000000e+00> : vector<8x128xf32>
    %67 = tpu.matmul %66, %9, %cst_26 {dimension_numbers = #tpu.dot_dimension_numbers<[1], [0], [0], [1], [0, 0, 1, 1], [], []>} : vector<8x8xf32>, vector<8x128xf32>, vector<8x128xf32> -> vector<8x128xf32>
    %cst_27 = arith.constant 1.000000e-30 : f32
    %68 = vector.broadcast %cst_27 : f32 to vector<8x128xf32>
    %69 = arith.maximumf %67, %68 : vector<8x128xf32>
    %70 = math.log %69 : vector<8x128xf32>
    %71 = math.log %52 : vector<1x128xf32>
    %72 = vector.broadcast %71 : vector<1x128xf32> to vector<8x128xf32>
    %73 = arith.subf %70, %72 : vector<8x128xf32>
    %cst_28 = arith.constant -353.535675 : f32
    %74 = vector.broadcast %cst_28 : f32 to vector<8x128xf32>
    %75 = arith.subf %73, %74 : vector<8x128xf32>
    %cst_29 = arith.constant 5.000000e-01 : f32
    %76 = vector.broadcast %cst_29 : f32 to vector<8x128xf32>
    %77 = arith.cmpf ogt, %9, %76 : vector<8x128xf32>
    %cst_30 = arith.constant 0.000000e+00 : f32
    %78 = vector.broadcast %cst_30 : f32 to vector<8x128xf32>
    %79 = arith.select %77, %75, %78 : vector<8x128xi1>, vector<8x128xf32>
    %cst_31 = arith.constant dense<0.000000e+00> : vector<128xf32>
    %80 = vector.multi_reduction <add>, %79, %cst_31 [0] : vector<8x128xf32> to vector<128xf32>
    %81 = vector.shape_cast %80 : vector<128xf32> to vector<1x128xf32>
    %cst_32 = arith.constant 9.99999974E-6 : f32
    %82 = vector.broadcast %cst_32 : f32 to vector<1x128xf32>
    %83 = arith.addf %81, %82 : vector<1x128xf32>
    %cst_33 = arith.constant 1.000000e+00 : f32
    %84 = vector.broadcast %cst_33 : f32 to vector<1x128xf32>
    %85 = arith.divf %84, %83 : vector<1x128xf32>
    %86 = arith.mulf %55, %9 : vector<8x128xf32>
    %87 = vector.broadcast %85 : vector<1x128xf32> to vector<8x128xf32>
    %88 = arith.mulf %86, %87 : vector<8x128xf32>
    %89 = vector.shape_cast %88 : vector<8x128xf32> to vector<1x8x128xf32>
    %cst_34 = arith.constant dense<0.000000e+00> : vector<1xf32>
    %90 = vector.multi_reduction <add>, %89, %cst_34 [1, 2] : vector<1x8x128xf32> to vector<1xf32>
    %91 = vector.shape_cast %90 : vector<1xf32> to vector<1x1x1xf32>
    %92 = vector.extract %91[0, 0, 0] : f32 from vector<1x1x1xf32>
    %cst_35 = arith.constant 1.000000e+00 : f32
    %93 = vector.broadcast %cst_35 : f32 to vector<8x128xf32>
    %94 = arith.subf %93, %9 : vector<8x128xf32>
    %95 = arith.mulf %55, %94 : vector<8x128xf32>
    %96 = vector.broadcast %85 : vector<1x128xf32> to vector<8x128xf32>
    %97 = arith.mulf %95, %96 : vector<8x128xf32>
    %98 = vector.shape_cast %97 : vector<8x128xf32> to vector<1x8x128xf32>
    %cst_36 = arith.constant dense<0.000000e+00> : vector<1xf32>
    %99 = vector.multi_reduction <add>, %98, %cst_36 [1, 2] : vector<1x8x128xf32> to vector<1xf32>
    %100 = vector.shape_cast %99 : vector<1xf32> to vector<1x1x1xf32>
    %101 = vector.extract %100[0, 0, 0] : f32 from vector<1x1x1xf32>
    %cst_37 = arith.constant 4.800000e+01 : f32
    %102 = arith.divf %101, %cst_37 : f32
    %cst_38 = arith.constant 1.000000e+00 : f32
    %103 = arith.addf %cst_38, %102 : f32
    %cst_39 = arith.constant 7.000000e+00 : f32
    %104 = arith.divf %92, %cst_39 : f32
    %cst_40 = arith.constant 1.000000e+00 : f32
    %105 = arith.subf %cst_40, %104 : f32
    %106 = arith.addf %103, %105 : f32
    %cst_41 = arith.constant 2.000000e+00 : f32
    %107 = arith.divf %106, %cst_41 : f32
    %108 = tpu.iota {dimensions = array<i32: 0>} : vector<8x128xi32>
    %c0_i32 = arith.constant 0 : i32
    %109 = vector.broadcast %c0_i32 : i32 to vector<8x128xi32>
    %110 = arith.cmpi eq, %108, %109 : vector<8x128xi32>
    %c7_i32 = arith.constant 7 : i32
    %111 = vector.broadcast %c7_i32 : i32 to vector<8x128xi32>
    %112 = arith.cmpi eq, %4, %111 : vector<8x128xi32>
    %113 = arith.andi %110, %112 : vector<8x128xi1>
    %114 = vector.broadcast %107 : f32 to vector<8x128xf32>
    %115 = arith.select %113, %114, %33 : vector<8x128xi1>, vector<8x128xf32>
    %c0_42 = arith.constant 0 : index
    %c0_43 = arith.constant 0 : index
    %116 = vector.load %arg7[%c0_42, %c0_43] : memref<8x128xf32, #tpu.memory_space<vmem>>, vector<8x128xf32>
    tpu.vector_store %arg7[%c0_42, %c0_43], %115 {strides = array<i32>} : memref<8x128xf32, #tpu.memory_space<vmem>>, vector<8x128xf32>,
    return
  }
  func.func @transform_0(%arg0: i32) -> (i32, i32) {
    %c0_i32 = arith.constant 0 : i32
    %c0_i32_0 = arith.constant 0 : i32
    %c0_i32_1 = arith.constant 0 : i32
    return %c0_i32, %c0_i32_0 : i32, i32
  }
  func.func @transform_1(%arg0: i32) -> (i32, i32) {
    %c0_i32 = arith.constant 0 : i32
    %c0_i32_0 = arith.constant 0 : i32
    %c0_i32_1 = arith.constant 0 : i32
    return %c0_i32, %c0_i32_0 : i32, i32
  }
  func.func @transform_2(%arg0: i32) -> (i32, i32) {
    %c0_i32 = arith.constant 0 : i32
    %c0_i32_0 = arith.constant 0 : i32
    %c0_i32_1 = arith.constant 0 : i32
    return %c0_i32, %c0_i32_0 : i32, i32
  }
  func.func @transform_3(%arg0: i32) -> (i32, i32) {
    %c0_i32 = arith.constant 0 : i32
    %c0_i32_0 = arith.constant 0 : i32
    %c0_i32_1 = arith.constant 0 : i32
    return %c0_i32, %c0_i32_0 : i32, i32
  }
  func.func @transform_4(%arg0: i32) -> (i32, i32) {
    %c0_i32 = arith.constant 0 : i32
    %c0_i32_0 = arith.constant 0 : i32
    %c0_i32_1 = arith.constant 0 : i32
    return %c0_i32, %c0_i32_0 : i32, i32
  }
  func.func @transform_5(%arg0: i32) -> (i32, i32) {
    %c0_i32 = arith.constant 0 : i32
    %c0_i32_0 = arith.constant 0 : i32
    %c0_i32_1 = arith.constant 0 : i32
    return %c0_i32, %c0_i32_0 : i32, i32
  }
  func.func @transform_6(%arg0: i32) -> (i32, i32) {
    %c0_i32 = arith.constant 0 : i32
    %c0_i32_0 = arith.constant 0 : i32
    %c0_i32_1 = arith.constant 0 : i32
    return %c0_i32, %c0_i32_0 : i32, i32
  }
}

</mosaic_0001>

<llo_original>
// kernel: _forward_device.1
$region0: #{_forward_device.1}
  #allocation0 [shape = 'u32[]', space=smem, size = 0x4, offset = 0x4, fixed_abs, tag = 'smem constant byte address 0x4 - core index']
  #allocation1 [shape = 'u32[144,128]{1,0:T(1,128)}', space=vmem, size = 0x12000, scoped, tag = 'internal scratch']
  %s0 = inlined_call_operand.vmem [shape: bf16[8,768], index: 0, kind: input, shape index: {}]
  %s1 = inlined_call_operand.hbm [shape: bf16[768,512], index: 1, kind: input, shape index: {}]
  %s2 = inlined_call_operand.vmem [shape: bf16[512,128], index: 2, kind: input, shape index: {}]
  %s3 = inlined_call_operand.vmem [shape: f32[1,128], index: 3, kind: input, shape index: {}]
  %s4 = inlined_call_operand.vmem [shape: f32[1,128], index: 4, kind: input, shape index: {}]
  %s5 = inlined_call_operand.vmem [shape: s32[8,1], index: 5, kind: input, shape index: {}]
  %s6 = inlined_call_operand.vmem [shape: f32[8,128], index: 6, kind: output, shape index: {}]
  %s7 = sld [smem:[#allocation0]]
  $region38: #{_forward_device.1} parent=0
    _
  %s9 = ssub.s32 1, %s7
  %s10 = scalar_select 0, %s9, %s7
  $region1: #{_forward_device.1} parent=0
    #allocation2 [shape = 'u8[786432]{0}', space=vmem, size = 0xc0000, scoped, tag = 'input window, operand 1, single buffered']
    #allocation3 [shape = 's32[1]{0}', space=sflag, size = 0x4, scoped, tag = 'scoped memory for _forward_device.1']
    %11 = vsyncpa [#allocation3], 0
    // Predicated region
    $region2: #{_forward_device.1} parent=1 // pred_check
      _
    $region3: #{_forward_device.1} parent=1 // pred_check_branch
      %13 = sbr.rel (0) target = $region5
    $region4: #{_forward_device.1} parent=1 // pred_region
      _
    $region5: #{_forward_device.1} parent=1 // pred_fallthru
      _
    // Predicated region
    $region6: #{_forward_device.1} parent=1 // pred_check
      _
    $region7: #{_forward_device.1} parent=1 // pred_check_branch
      %15 = sbr.rel (0) target = $region9
    $region8: #{_forward_device.1} parent=1 // pred_region
      %s17 = ssub.s32 24576, 24576
      %18 = vsyncadd [#allocation3], %s17
      %s19 = sshll.u32 [#allocation2], 4
      %s20 = int_to_ptr.vmem [resolvable:$true] %s19
      %25 = dma.hbm_to_vmem [thread:$0]  %s1, 24576, %s20, [#allocation3], 256, 256, 16
    $region9: #{_forward_device.1} parent=1 // pred_fallthru
      _
    // Predicated region
    $region10: #{_forward_device.1} parent=1 // pred_check
      _
    $region11: #{_forward_device.1} parent=1 // pred_check_branch
      %27 = sbr.rel (0) target = $region13
    $region12: #{_forward_device.1} parent=1 // pred_region
      _
    $region13: #{_forward_device.1} parent=1 // pred_fallthru
      _
    // Predicated region
    $region14: #{_forward_device.1} parent=1 // pred_check
      _
    $region15: #{_forward_device.1} parent=1 // pred_check_branch
      %29 = sbr.rel (0) target = $region17
    $region16: #{_forward_device.1} parent=1 // pred_region
      _
    $region17: #{_forward_device.1} parent=1 // pred_fallthru
      _
    // Predicated region
    $region18: #{_forward_device.1} parent=1 // pred_check
      _
    $region19: #{_forward_device.1} parent=1 // pred_check_branch
      %31 = sbr.rel (0) target = $region21
    $region20: #{_forward_device.1} parent=1 // pred_region
      _
    $region21: #{_forward_device.1} parent=1 // pred_fallthru
      _
    // Predicated region
    $region22: #{_forward_device.1} parent=1 // pred_check
      _
    $region23: #{_forward_device.1} parent=1 // pred_check_branch
      %33 = sbr.rel (0) target = $region25
    $region24: #{_forward_device.1} parent=1 // pred_region
      _
    $region25: #{_forward_device.1} parent=1 // pred_fallthru
      _
    // Predicated region
    $region26: #{_forward_device.1} parent=1 // pred_check
      _
    $region27: #{_forward_device.1} parent=1 // pred_check_branch
      %35 = sbr.rel (0) target = $region29
    $region28: #{_forward_device.1} parent=1 // pred_region
      %36 = dma.done [#allocation3], 24576
    $region29: #{_forward_device.1} parent=1 // pred_fallthru
      _
    %v38 = vld [vmem:[%s0] sm:$0xff]
    %v39 = vld [vmem:[%s0 + $0x8] sm:$0xff]
    %v40 = vld [vmem:[%s0 + $0x10] sm:$0xff]
    %v41 = vld [vmem:[#allocation2] sm:$0xff]
    %v42 = vld [vmem:[#allocation2 + $0x8] sm:$0xff]
    %v43 = vld [vmem:[#allocation2 + $0x10] sm:$0xff]
    %v44 = vld [vmem:[#allocation2 + $0x18] sm:$0xff]
    %v45 = vld [vmem:[#allocation2 + $0x20] sm:$0xff]
    %v46 = vld [vmem:[#allocation2 + $0x28] sm:$0xff]
    %v47 = vld [vmem:[#allocation2 + $0x30] sm:$0xff]
    %v48 = vld [vmem:[#allocation2 + $0x38] sm:$0xff]
    %v49 = vld [vmem:[#allocation2 + $0x40] sm:$0xff]
    %v50 = vld [vmem:[#allocation2 + $0x48] sm:$0xff]
    %v51 = vld [vmem:[#allocation2 + $0x50] sm:$0xff]
    %v52 = vld [vmem:[#allocation2 + $0x58] sm:$0xff]
    %v53 = vld [vmem:[#allocation2 + $0x60] sm:$0xff]
    %v54 = vld [vmem:[#allocation2 + $0x68] sm:$0xff]
    %v55 = vld [vmem:[#allocation2 + $0x70] sm:$0xff]
    %v56 = vld [vmem:[#allocation2 + $0x78] sm:$0xff]
    %v57 = vld [vmem:[#allocation2 + $0x80] sm:$0xff]
    %v58 = vld [vmem:[#allocation2 + $0x88] sm:$0xff]
    %v59 = vld [vmem:[#allocation2 + $0x90] sm:$0xff]
    %v60 = vld [vmem:[#allocation2 + $0x98] sm:$0xff]
    %v61 = vld [vmem:[#allocation2 + $0xa0] sm:$0xff]
    %v62 = vld [vmem:[#allocation2 + $0xa8] sm:$0xff]
    %v63 = vld [vmem:[#allocation2 + $0xb0] sm:$0xff]
    %v64 = vld [vmem:[#allocation2 + $0xb8] sm:$0xff]
    %v65 = vld [vmem:[#allocation2 + $0xc0] sm:$0xff]
    %v66 = vld [vmem:[#allocation2 + $0xc8] sm:$0xff]
    %v67 = vld [vmem:[#allocation2 + $0xd0] sm:$0xff]
    %v68 = vld [vmem:[#allocation2 + $0xd8] sm:$0xff]
    %v69 = vld [vmem:[#allocation2 + $0xe0] sm:$0xff]
    %v70 = vld [vmem:[#allocation2 + $0xe8] sm:$0xff]
    %v71 = vld [vmem:[#allocation2 + $0xf0] sm:$0xff]
    %v72 = vld [vmem:[#allocation2 + $0xf8] sm:$0xff]
    %v73 = vld [vmem:[#allocation2 + $0x100] sm:$0xff]
    %v74 = vld [vmem:[#allocation2 + $0x108] sm:$0xff]
    %v75 = vld [vmem:[#allocation2 + $0x110] sm:$0xff]
    %v76 = vld [vmem:[#allocation2 + $0x118] sm:$0xff]
    %v77 = vld [vmem:[#allocation2 + $0x120] sm:$0xff]
    %v78 = vld [vmem:[#allocation2 + $0x128] sm:$0xff]
    %v79 = vld [vmem:[#allocation2 + $0x130] sm:$0xff]
    %v80 = vld [vmem:[#allocation2 + $0x138] sm:$0xff]
    %v81 = vld [vmem:[#allocation2 + $0x140] sm:$0xff]
    %v82 = vld [vmem:[#allocation2 + $0x148] sm:$0xff]
    %v83 = vld [vmem:[#allocation2 + $0x150] sm:$0xff]
    %v84 = vld [vmem:[#allocation2 + $0x158] sm:$0xff]
    %v85 = vld [vmem:[#allocation2 + $0x160] sm:$0xff]
    %v86 = vld [vmem:[#allocation2 + $0x168] sm:$0xff]
    %v87 = vld [vmem:[#allocation2 + $0x170] sm:$0xff]
    %v88 = vld [vmem:[#allocation2 + $0x178] sm:$0xff]
    %v89 = vld [vmem:[#allocation2 + $0x180] sm:$0xff]
    %v90 = vld [vmem:[#allocation2 + $0x188] sm:$0xff]
    %v91 = vld [vmem:[#allocation2 + $0x190] sm:$0xff]
    %v92 = vld [vmem:[#allocation2 + $0x198] sm:$0xff]
    %v93 = vld [vmem:[#allocation2 + $0x1a0] sm:$0xff]
    %v94 = vld [vmem:[#allocation2 + $0x1a8] sm:$0xff]
    %v95 = vld [vmem:[#allocation2 + $0x1b0] sm:$0xff]
    %v96 = vld [vmem:[#allocation2 + $0x1b8] sm:$0xff]
    %v97 = vld [vmem:[#allocation2 + $0x1c0] sm:$0xff]
    %v98 = vld [vmem:[#allocation2 + $0x1c8] sm:$0xff]
    %v99 = vld [vmem:[#allocation2 + $0x1d0] sm:$0xff]
    %v100 = vld [vmem:[#allocation2 + $0x1d8] sm:$0xff]
    %v101 = vld [vmem:[#allocation2 + $0x1e0] sm:$0xff]
    %v102 = vld [vmem:[#allocation2 + $0x1e8] sm:$0xff]
    %v103 = vld [vmem:[#allocation2 + $0x1f0] sm:$0xff]
    %v104 = vld [vmem:[#allocation2 + $0x1f8] sm:$0xff]
    %v105 = vld [vmem:[#allocation2 + $0x200] sm:$0xff]
    %v106 = vld [vmem:[#allocation2 + $0x208] sm:$0xff]
    %v107 = vld [vmem:[#allocation2 + $0x210] sm:$0xff]
    %v108 = vld [vmem:[#allocation2 + $0x218] sm:$0xff]
    %v109 = vld [vmem:[#allocation2 + $0x220] sm:$0xff]
    %v110 = vld [vmem:[#allocation2 + $0x228] sm:$0xff]
    %v111 = vld [vmem:[#allocation2 + $0x230] sm:$0xff]
    %v112 = vld [vmem:[#allocation2 + $0x238] sm:$0xff]
    %v113 = vld [vmem:[#allocation2 + $0x240] sm:$0xff]
    %v114 = vld [vmem:[#allocation2 + $0x248] sm:$0xff]
    %v115 = vld [vmem:[#allocation2 + $0x250] sm:$0xff]
    %v116 = vld [vmem:[#allocation2 + $0x258] sm:$0xff]
    %v117 = vld [vmem:[#allocation2 + $0x260] sm:$0xff]
    %v118 = vld [vmem:[#allocation2 + $0x268] sm:$0xff]
    %v119 = vld [vmem:[#allocation2 + $0x270] sm:$0xff]
    %v120 = vld [vmem:[#allocation2 + $0x278] sm:$0xff]
    %v121 = vld [vmem:[#allocation2 + $0x280] sm:$0xff]
    %v122 = vld [vmem:[#allocation2 + $0x288] sm:$0xff]
    %v123 = vld [vmem:[#allocation2 + $0x290] sm:$0xff]
    %v124 = vld [vmem:[#allocation2 + $0x298] sm:$0xff]
    %v125 = vld [vmem:[#allocation2 + $0x2a0] sm:$0xff]
    %v126 = vld [vmem:[#allocation2 + $0x2a8] sm:$0xff]
    %v127 = vld [vmem:[#allocation2 + $0x2b0] sm:$0xff]
    %v128 = vld [vmem:[#allocation2 + $0x2b8] sm:$0xff]
    %v129 = vld [vmem:[#allocation2 + $0x2c0] sm:$0xff]
    %v130 = vld [vmem:[#allocation2 + $0x2c8] sm:$0xff]
    %v131 = vld [vmem:[#allocation2 + $0x2d0] sm:$0xff]
    %v132 = vld [vmem:[#allocation2 + $0x2d8] sm:$0xff]
    %v133 = vld [vmem:[#allocation2 + $0x2e0] sm:$0xff]
    %v134 = vld [vmem:[#allocation2 + $0x2e8] sm:$0xff]
    %v135 = vld [vmem:[#allocation2 + $0x2f0] sm:$0xff]
    %v136 = vld [vmem:[#allocation2 + $0x2f8] sm:$0xff]
    %v137 = vld [vmem:[#allocation2 + $0x300] sm:$0xff]
    %v138 = vld [vmem:[#allocation2 + $0x308] sm:$0xff]
    %v139 = vld [vmem:[#allocation2 + $0x310] sm:$0xff]
    %v140 = vld [vmem:[#allocation2 + $0x318] sm:$0xff]
    %v141 = vld [vmem:[#allocation2 + $0x320] sm:$0xff]
    %v142 = vld [vmem:[#allocation2 + $0x328] sm:$0xff]
    %v143 = vld [vmem:[#allocation2 + $0x330] sm:$0xff]
    %v144 = vld [vmem:[#allocation2 + $0x338] sm:$0xff]
    %v145 = vld [vmem:[#allocation2 + $0x340] sm:$0xff]
    %v146 = vld [vmem:[#allocation2 + $0x348] sm:$0xff]
    %v147 = vld [vmem:[#allocation2 + $0x350] sm:$0xff]
    %v148 = vld [vmem:[#allocation2 + $0x358] sm:$0xff]
    %v149 = vld [vmem:[#allocation2 + $0x360] sm:$0xff]
    %v150 = vld [vmem:[#allocation2 + $0x368] sm:$0xff]
    %v151 = vld [vmem:[#allocation2 + $0x370] sm:$0xff]
    %v152 = vld [vmem:[#allocation2 + $0x378] sm:$0xff]
    %v153 = vld [vmem:[#allocation2 + $0x380] sm:$0xff]
    %v154 = vld [vmem:[#allocation2 + $0x388] sm:$0xff]
    %v155 = vld [vmem:[#allocation2 + $0x390] sm:$0xff]
    %v156 = vld [vmem:[#allocation2 + $0x398] sm:$0xff]
    %v157 = vld [vmem:[#allocation2 + $0x3a0] sm:$0xff]
    %v158 = vld [vmem:[#allocation2 + $0x3a8] sm:$0xff]
    %v159 = vld [vmem:[#allocation2 + $0x3b0] sm:$0xff]
    %v160 = vld [vmem:[#allocation2 + $0x3b8] sm:$0xff]
    %v161 = vld [vmem:[#allocation2 + $0x3c0] sm:$0xff]
    %v162 = vld [vmem:[#allocation2 + $0x3c8] sm:$0xff]
    %v163 = vld [vmem:[#allocation2 + $0x3d0] sm:$0xff]
    %v164 = vld [vmem:[#allocation2 + $0x3d8] sm:$0xff]
    %v165 = vld [vmem:[#allocation2 + $0x3e0] sm:$0xff]
    %v166 = vld [vmem:[#allocation2 + $0x3e8] sm:$0xff]
    %v167 = vld [vmem:[#allocation2 + $0x3f0] sm:$0xff]
    %v168 = vld [vmem:[#allocation2 + $0x3f8] sm:$0xff]
    %v169 = vld [vmem:[#allocation2 + $0x400] sm:$0xff]
    %v170 = vld [vmem:[#allocation2 + $0x408] sm:$0xff]
    %v171 = vld [vmem:[#allocation2 + $0x410] sm:$0xff]
    %v172 = vld [vmem:[#allocation2 + $0x418] sm:$0xff]
    %v173 = vld [vmem:[#allocation2 + $0x420] sm:$0xff]
    %v174 = vld [vmem:[#allocation2 + $0x428] sm:$0xff]
    %v175 = vld [vmem:[#allocation2 + $0x430] sm:$0xff]
    %v176 = vld [vmem:[#allocation2 + $0x438] sm:$0xff]
    %v177 = vld [vmem:[#allocation2 + $0x440] sm:$0xff]
    %v178 = vld [vmem:[#allocation2 + $0x448] sm:$0xff]
    %v179 = vld [vmem:[#allocation2 + $0x450] sm:$0xff]
    %v180 = vld [vmem:[#allocation2 + $0x458] sm:$0xff]
    %v181 = vld [vmem:[#allocation2 + $0x460] sm:$0xff]
    %v182 = vld [vmem:[#allocation2 + $0x468] sm:$0xff]
    %v183 = vld [vmem:[#allocation2 + $0x470] sm:$0xff]
    %v184 = vld [vmem:[#allocation2 + $0x478] sm:$0xff]
    %v185 = vld [vmem:[#allocation2 + $0x480] sm:$0xff]
    %v186 = vld [vmem:[#allocation2 + $0x488] sm:$0xff]
    %v187 = vld [vmem:[#allocation2 + $0x490] sm:$0xff]
    %v188 = vld [vmem:[#allocation2 + $0x498] sm:$0xff]
    %v189 = vld [vmem:[#allocation2 + $0x4a0] sm:$0xff]
    %v190 = vld [vmem:[#allocation2 + $0x4a8] sm:$0xff]
    %v191 = vld [vmem:[#allocation2 + $0x4b0] sm:$0xff]
    %v192 = vld [vmem:[#allocation2 + $0x4b8] sm:$0xff]
    %v193 = vld [vmem:[#allocation2 + $0x4c0] sm:$0xff]
    %v194 = vld [vmem:[#allocation2 + $0x4c8] sm:$0xff]
    %v195 = vld [vmem:[#allocation2 + $0x4d0] sm:$0xff]
    %v196 = vld [vmem:[#allocation2 + $0x4d8] sm:$0xff]
    %v197 = vld [vmem:[#allocation2 + $0x4e0] sm:$0xff]
    %v198 = vld [vmem:[#allocation2 + $0x4e8] sm:$0xff]
    %v199 = vld [vmem:[#allocation2 + $0x4f0] sm:$0xff]
    %v200 = vld [vmem:[#allocation2 + $0x4f8] sm:$0xff]
    %v201 = vld [vmem:[#allocation2 + $0x500] sm:$0xff]
    %v202 = vld [vmem:[#allocation2 + $0x508] sm:$0xff]
    %v203 = vld [vmem:[#allocation2 + $0x510] sm:$0xff]
    %v204 = vld [vmem:[#allocation2 + $0x518] sm:$0xff]
    %v205 = vld [vmem:[#allocation2 + $0x520] sm:$0xff]
    %v206 = vld [vmem:[#allocation2 + $0x528] sm:$0xff]
    %v207 = vld [vmem:[#allocation2 + $0x530] sm:$0xff]
    %v208 = vld [vmem:[#allocation2 + $0x538] sm:$0xff]
    %v209 = vld [vmem:[#allocation2 + $0x540] sm:$0xff]
    %v210 = vld [vmem:[#allocation2 + $0x548] sm:$0xff]
    %v211 = vld [vmem:[#allocation2 + $0x550] sm:$0xff]
    %v212 = vld [vmem:[#allocation2 + $0x558] sm:$0xff]
    %v213 = vld [vmem:[#allocation2 + $0x560] sm:$0xff]
    %v214 = vld [vmem:[#allocation2 + $0x568] sm:$0xff]
    %v215 = vld [vmem:[#allocation2 + $0x570] sm:$0xff]
    %v216 = vld [vmem:[#allocation2 + $0x578] sm:$0xff]
    %v217 = vld [vmem:[#allocation2 + $0x580] sm:$0xff]
    %v218 = vld [vmem:[#allocation2 + $0x588] sm:$0xff]
    %v219 = vld [vmem:[#allocation2 + $0x590] sm:$0xff]
    %v220 = vld [vmem:[#allocation2 + $0x598] sm:$0xff]
    %v221 = vld [vmem:[#allocation2 + $0x5a0] sm:$0xff]
    %v222 = vld [vmem:[#allocation2 + $0x5a8] sm:$0xff]
    %v223 = vld [vmem:[#allocation2 + $0x5b0] sm:$0xff]
    %v224 = vld [vmem:[#allocation2 + $0x5b8] sm:$0xff]
    %v225 = vld [vmem:[#allocation2 + $0x5c0] sm:$0xff]
    %v226 = vld [vmem:[#allocation2 + $0x5c8] sm:$0xff]
    %v227 = vld [vmem:[#allocation2 + $0x5d0] sm:$0xff]
    %v228 = vld [vmem:[#allocation2 + $0x5d8] sm:$0xff]
    %v229 = vld [vmem:[#allocation2 + $0x5e0] sm:$0xff]
    %v230 = vld [vmem:[#allocation2 + $0x5e8] sm:$0xff]
    %v231 = vld [vmem:[#allocation2 + $0x5f0] sm:$0xff]
    %v232 = vld [vmem:[#allocation2 + $0x5f8] sm:$0xff]
    %v236 = vunpack.c.l.b16 %v38
    %v237 = vunpack.c.h.b16 %v38
    %v238 = vunpack.c.l.b16 %v39
    %v239 = vunpack.c.h.b16 %v39
    %v240 = vunpack.c.l.b16 %v40
    %v241 = vunpack.c.h.b16 %v40
    %v242 = vpack.c.b16 %v236, %v236
    %v243 = vpack.c.b16 %v237, %v237
    %v244 = vpack.c.b16 %v238, %v238
    %v245 = vpack.c.b16 %v239, %v239
    %v246 = vpack.c.b16 %v240, %v240
    %v247 = vpack.c.b16 %v241, %v241
    %v446 = vunpack.c.l.b16 %v41
    %v447 = vunpack.c.h.b16 %v41
    %v448 = vunpack.c.l.b16 %v42
    %v449 = vunpack.c.h.b16 %v42
    %v450 = vunpack.c.l.b16 %v43
    %v451 = vunpack.c.h.b16 %v43
    %v452 = vunpack.c.l.b16 %v44
    %v453 = vunpack.c.h.b16 %v44
    %v454 = vunpack.c.l.b16 %v45
    %v455 = vunpack.c.h.b16 %v45
    %v456 = vunpack.c.l.b16 %v46
    %v457 = vunpack.c.h.b16 %v46
    %v458 = vunpack.c.l.b16 %v47
    %v459 = vunpack.c.h.b16 %v47
    %v460 = vunpack.c.l.b16 %v48
    %v461 = vunpack.c.h.b16 %v48
    %v462 = vunpack.c.l.b16 %v49
    %v463 = vunpack.c.h.b16 %v49
    %v464 = vunpack.c.l.b16 %v50
    %v465 = vunpack.c.h.b16 %v50
    %v466 = vunpack.c.l.b16 %v51
    %v467 = vunpack.c.h.b16 %v51
    %v468 = vunpack.c.l.b16 %v52
    %v469 = vunpack.c.h.b16 %v52
    %v470 = vunpack.c.l.b16 %v53
    %v471 = vunpack.c.h.b16 %v53
    %v472 = vunpack.c.l.b16 %v54
    %v473 = vunpack.c.h.b16 %v54
    %v474 = vunpack.c.l.b16 %v55
    %v475 = vunpack.c.h.b16 %v55
    %v476 = vunpack.c.l.b16 %v56
    %v477 = vunpack.c.h.b16 %v56
    %v478 = vunpack.c.l.b16 %v57
    %v479 = vunpack.c.h.b16 %v57
    %v480 = vunpack.c.l.b16 %v58
    %v481 = vunpack.c.h.b16 %v58
    %v482 = vunpack.c.l.b16 %v59
    %v483 = vunpack.c.h.b16 %v59
    %v484 = vunpack.c.l.b16 %v60
    %v485 = vunpack.c.h.b16 %v60
    %v486 = vunpack.c.l.b16 %v61
    %v487 = vunpack.c.h.b16 %v61
    %v488 = vunpack.c.l.b16 %v62
    %v489 = vunpack.c.h.b16 %v62
    %v490 = vunpack.c.l.b16 %v63
    %v491 = vunpack.c.h.b16 %v63
    %v492 = vunpack.c.l.b16 %v64
    %v493 = vunpack.c.h.b16 %v64
    %v494 = vunpack.c.l.b16 %v65
    %v495 = vunpack.c.h.b16 %v65
    %v496 = vunpack.c.l.b16 %v66
    %v497 = vunpack.c.h.b16 %v66
    %v498 = vunpack.c.l.b16 %v67
    %v499 = vunpack.c.h.b16 %v67
    %v500 = vunpack.c.l.b16 %v68
    %v501 = vunpack.c.h.b16 %v68
    %v502 = vunpack.c.l.b16 %v69
    %v503 = vunpack.c.h.b16 %v69
    %v504 = vunpack.c.l.b16 %v70
    %v505 = vunpack.c.h.b16 %v70
    %v506 = vunpack.c.l.b16 %v71
    %v507 = vunpack.c.h.b16 %v71
    %v508 = vunpack.c.l.b16 %v72
    %v509 = vunpack.c.h.b16 %v72
    %v510 = vunpack.c.l.b16 %v73
    %v511 = vunpack.c.h.b16 %v73
    %v512 = vunpack.c.l.b16 %v74
    %v513 = vunpack.c.h.b16 %v74
    %v514 = vunpack.c.l.b16 %v75
    %v515 = vunpack.c.h.b16 %v75
    %v516 = vunpack.c.l.b16 %v76
    %v517 = vunpack.c.h.b16 %v76
    %v518 = vunpack.c.l.b16 %v77
    %v519 = vunpack.c.h.b16 %v77
    %v520 = vunpack.c.l.b16 %v78
    %v521 = vunpack.c.h.b16 %v78
    %v522 = vunpack.c.l.b16 %v79
    %v523 = vunpack.c.h.b16 %v79
    %v524 = vunpack.c.l.b16 %v80
    %v525 = vunpack.c.h.b16 %v80
    %v526 = vunpack.c.l.b16 %v81
    %v527 = vunpack.c.h.b16 %v81
    %v528 = vunpack.c.l.b16 %v82
    %v529 = vunpack.c.h.b16 %v82
    %v530 = vunpack.c.l.b16 %v83
    %v531 = vunpack.c.h.b16 %v83
    %v532 = vunpack.c.l.b16 %v84
    %v533 = vunpack.c.h.b16 %v84
    %v534 = vunpack.c.l.b16 %v85
    %v535 = vunpack.c.h.b16 %v85
    %v536 = vunpack.c.l.b16 %v86
    %v537 = vunpack.c.h.b16 %v86
    %v538 = vunpack.c.l.b16 %v87
    %v539 = vunpack.c.h.b16 %v87
    %v540 = vunpack.c.l.b16 %v88
    %v541 = vunpack.c.h.b16 %v88
    %v542 = vunpack.c.l.b16 %v89
    %v543 = vunpack.c.h.b16 %v89
    %v544 = vunpack.c.l.b16 %v90
    %v545 = vunpack.c.h.b16 %v90
    %v546 = vunpack.c.l.b16 %v91
    %v547 = vunpack.c.h.b16 %v91
    %v548 = vunpack.c.l.b16 %v92
    %v549 = vunpack.c.h.b16 %v92
    %v550 = vunpack.c.l.b16 %v93
    %v551 = vunpack.c.h.b16 %v93
    %v552 = vunpack.c.l.b16 %v94
    %v553 = vunpack.c.h.b16 %v94
    %v554 = vunpack.c.l.b16 %v95
    %v555 = vunpack.c.h.b16 %v95
    %v556 = vunpack.c.l.b16 %v96
    %v557 = vunpack.c.h.b16 %v96
    %v558 = vunpack.c.l.b16 %v97
    %v559 = vunpack.c.h.b16 %v97
    %v560 = vunpack.c.l.b16 %v98
    %v561 = vunpack.c.h.b16 %v98
    %v562 = vunpack.c.l.b16 %v99
    %v563 = vunpack.c.h.b16 %v99
    %v564 = vunpack.c.l.b16 %v100
    %v565 = vunpack.c.h.b16 %v100
    %v566 = vunpack.c.l.b16 %v101
    %v567 = vunpack.c.h.b16 %v101
    %v568 = vunpack.c.l.b16 %v102
    %v569 = vunpack.c.h.b16 %v102
    %v570 = vunpack.c.l.b16 %v103
    %v571 = vunpack.c.h.b16 %v103
    %v572 = vunpack.c.l.b16 %v104
    %v573 = vunpack.c.h.b16 %v104
    %v574 = vunpack.c.l.b16 %v105
    %v575 = vunpack.c.h.b16 %v105
    %v576 = vunpack.c.l.b16 %v106
    %v577 = vunpack.c.h.b16 %v106
    %v578 = vunpack.c.l.b16 %v107
    %v579 = vunpack.c.h.b16 %v107
    %v580 = vunpack.c.l.b16 %v108
    %v581 = vunpack.c.h.b16 %v108
    %v582 = vunpack.c.l.b16 %v109
    %v583 = vunpack.c.h.b16 %v109
    %v584 = vunpack.c.l.b16 %v110
    %v585 = vunpack.c.h.b16 %v110
    %v586 = vunpack.c.l.b16 %v111
    %v587 = vunpack.c.h.b16 %v111
    %v588 = vunpack.c.l.b16 %v112
    %v589 = vunpack.c.h.b16 %v112
    %v590 = vunpack.c.l.b16 %v113
    %v591 = vunpack.c.h.b16 %v113
    %v592 = vunpack.c.l.b16 %v114
    %v593 = vunpack.c.h.b16 %v114
    %v594 = vunpack.c.l.b16 %v115
    %v595 = vunpack.c.h.b16 %v115
    %v596 = vunpack.c.l.b16 %v116
    %v597 = vunpack.c.h.b16 %v116
    %v598 = vunpack.c.l.b16 %v117
    %v599 = vunpack.c.h.b16 %v117
    %v600 = vunpack.c.l.b16 %v118
    %v601 = vunpack.c.h.b16 %v118
    %v602 = vunpack.c.l.b16 %v119
    %v603 = vunpack.c.h.b16 %v119
    %v604 = vunpack.c.l.b16 %v120
    %v605 = vunpack.c.h.b16 %v120
    %v606 = vunpack.c.l.b16 %v121
    %v607 = vunpack.c.h.b16 %v121
    %v608 = vunpack.c.l.b16 %v122
    %v609 = vunpack.c.h.b16 %v122
    %v610 = vunpack.c.l.b16 %v123
    %v611 = vunpack.c.h.b16 %v123
    %v612 = vunpack.c.l.b16 %v124
    %v613 = vunpack.c.h.b16 %v124
    %v614 = vunpack.c.l.b16 %v125
    %v615 = vunpack.c.h.b16 %v125
    %v616 = vunpack.c.l.b16 %v126
    %v617 = vunpack.c.h.b16 %v126
    %v618 = vunpack.c.l.b16 %v127
    %v619 = vunpack.c.h.b16 %v127
    %v620 = vunpack.c.l.b16 %v128
    %v621 = vunpack.c.h.b16 %v128
    %v622 = vunpack.c.l.b16 %v129
    %v623 = vunpack.c.h.b16 %v129
    %v624 = vunpack.c.l.b16 %v130
    %v625 = vunpack.c.h.b16 %v130
    %v626 = vunpack.c.l.b16 %v131
    %v627 = vunpack.c.h.b16 %v131
    %v628 = vunpack.c.l.b16 %v132
    %v629 = vunpack.c.h.b16 %v132
    %v630 = vunpack.c.l.b16 %v133
    %v631 = vunpack.c.h.b16 %v133
    %v632 = vunpack.c.l.b16 %v134
    %v633 = vunpack.c.h.b16 %v134
    %v634 = vunpack.c.l.b16 %v135
    %v635 = vunpack.c.h.b16 %v135
    %v636 = vunpack.c.l.b16 %v136
    %v637 = vunpack.c.h.b16 %v136
    %v638 = vunpack.c.l.b16 %v137
    %v639 = vunpack.c.h.b16 %v137
    %v640 = vunpack.c.l.b16 %v138
    %v641 = vunpack.c.h.b16 %v138
    %v642 = vunpack.c.l.b16 %v139
    %v643 = vunpack.c.h.b16 %v139
    %v644 = vunpack.c.l.b16 %v140
    %v645 = vunpack.c.h.b16 %v140
    %v646 = vunpack.c.l.b16 %v141
    %v647 = vunpack.c.h.b16 %v141
    %v648 = vunpack.c.l.b16 %v142
    %v649 = vunpack.c.h.b16 %v142
    %v650 = vunpack.c.l.b16 %v143
    %v651 = vunpack.c.h.b16 %v143
    %v652 = vunpack.c.l.b16 %v144
    %v653 = vunpack.c.h.b16 %v144
    %v654 = vunpack.c.l.b16 %v145
    %v655 = vunpack.c.h.b16 %v145
    %v656 = vunpack.c.l.b16 %v146
    %v657 = vunpack.c.h.b16 %v146
    %v658 = vunpack.c.l.b16 %v147
    %v659 = vunpack.c.h.b16 %v147
    %v660 = vunpack.c.l.b16 %v148
    %v661 = vunpack.c.h.b16 %v148
    %v662 = vunpack.c.l.b16 %v149
    %v663 = vunpack.c.h.b16 %v149
    %v664 = vunpack.c.l.b16 %v150
    %v665 = vunpack.c.h.b16 %v150
    %v666 = vunpack.c.l.b16 %v151
    %v667 = vunpack.c.h.b16 %v151
    %v668 = vunpack.c.l.b16 %v152
    %v669 = vunpack.c.h.b16 %v152
    %v670 = vunpack.c.l.b16 %v153
    %v671 = vunpack.c.h.b16 %v153
    %v672 = vunpack.c.l.b16 %v154
    %v673 = vunpack.c.h.b16 %v154
    %v674 = vunpack.c.l.b16 %v155
    %v675 = vunpack.c.h.b16 %v155
    %v676 = vunpack.c.l.b16 %v156
    %v677 = vunpack.c.h.b16 %v156
    %v678 = vunpack.c.l.b16 %v157
    %v679 = vunpack.c.h.b16 %v157
    %v680 = vunpack.c.l.b16 %v158
    %v681 = vunpack.c.h.b16 %v158
    %v682 = vunpack.c.l.b16 %v159
    %v683 = vunpack.c.h.b16 %v159
    %v684 = vunpack.c.l.b16 %v160
    %v685 = vunpack.c.h.b16 %v160
    %v686 = vunpack.c.l.b16 %v161
    %v687 = vunpack.c.h.b16 %v161
    %v688 = vunpack.c.l.b16 %v162
    %v689 = vunpack.c.h.b16 %v162
    %v690 = vunpack.c.l.b16 %v163
    %v691 = vunpack.c.h.b16 %v163
    %v692 = vunpack.c.l.b16 %v164
    %v693 = vunpack.c.h.b16 %v164
    %v694 = vunpack.c.l.b16 %v165
    %v695 = vunpack.c.h.b16 %v165
    %v696 = vunpack.c.l.b16 %v166
    %v697 = vunpack.c.h.b16 %v166
    %v698 = vunpack.c.l.b16 %v167
    %v699 = vunpack.c.h.b16 %v167
    %v700 = vunpack.c.l.b16 %v168
    %v701 = vunpack.c.h.b16 %v168
    %v702 = vunpack.c.l.b16 %v169
    %v703 = vunpack.c.h.b16 %v169
    %v704 = vunpack.c.l.b16 %v170
    %v705 = vunpack.c.h.b16 %v170
    %v706 = vunpack.c.l.b16 %v171
    %v707 = vunpack.c.h.b16 %v171
    %v708 = vunpack.c.l.b16 %v172
    %v709 = vunpack.c.h.b16 %v172
    %v710 = vunpack.c.l.b16 %v173
    %v711 = vunpack.c.h.b16 %v173
    %v712 = vunpack.c.l.b16 %v174
    %v713 = vunpack.c.h.b16 %v174
    %v714 = vunpack.c.l.b16 %v175
    %v715 = vunpack.c.h.b16 %v175
    %v716 = vunpack.c.l.b16 %v176
    %v717 = vunpack.c.h.b16 %v176
    %v718 = vunpack.c.l.b16 %v177
    %v719 = vunpack.c.h.b16 %v177
    %v720 = vunpack.c.l.b16 %v178
    %v721 = vunpack.c.h.b16 %v178
    %v722 = vunpack.c.l.b16 %v179
    %v723 = vunpack.c.h.b16 %v179
    %v724 = vunpack.c.l.b16 %v180
    %v725 = vunpack.c.h.b16 %v180
    %v726 = vunpack.c.l.b16 %v181
    %v727 = vunpack.c.h.b16 %v181
    %v728 = vunpack.c.l.b16 %v182
    %v729 = vunpack.c.h.b16 %v182
    %v730 = vunpack.c.l.b16 %v183
    %v731 = vunpack.c.h.b16 %v183
    %v732 = vunpack.c.l.b16 %v184
    %v733 = vunpack.c.h.b16 %v184
    %v734 = vunpack.c.l.b16 %v185
    %v735 = vunpack.c.h.b16 %v185
    %v736 = vunpack.c.l.b16 %v186
    %v737 = vunpack.c.h.b16 %v186
    %v738 = vunpack.c.l.b16 %v187
    %v739 = vunpack.c.h.b16 %v187
    %v740 = vunpack.c.l.b16 %v188
    %v741 = vunpack.c.h.b16 %v188
    %v742 = vunpack.c.l.b16 %v189
    %v743 = vunpack.c.h.b16 %v189
    %v744 = vunpack.c.l.b16 %v190
    %v745 = vunpack.c.h.b16 %v190
    %v746 = vunpack.c.l.b16 %v191
    %v747 = vunpack.c.h.b16 %v191
    %v748 = vunpack.c.l.b16 %v192
    %v749 = vunpack.c.h.b16 %v192
    %v750 = vunpack.c.l.b16 %v193
    %v751 = vunpack.c.h.b16 %v193
    %v752 = vunpack.c.l.b16 %v194
    %v753 = vunpack.c.h.b16 %v194
    %v754 = vunpack.c.l.b16 %v195
    %v755 = vunpack.c.h.b16 %v195
    %v756 = vunpack.c.l.b16 %v196
    %v757 = vunpack.c.h.b16 %v196
    %v758 = vunpack.c.l.b16 %v197
    %v759 = vunpack.c.h.b16 %v197
    %v760 = vunpack.c.l.b16 %v198
    %v761 = vunpack.c.h.b16 %v198
    %v762 = vunpack.c.l.b16 %v199
    %v763 = vunpack.c.h.b16 %v199
    %v764 = vunpack.c.l.b16 %v200
    %v765 = vunpack.c.h.b16 %v200
    %v766 = vunpack.c.l.b16 %v201
    %v767 = vunpack.c.h.b16 %v201
    %v768 = vunpack.c.l.b16 %v202
    %v769 = vunpack.c.h.b16 %v202
    %v770 = vunpack.c.l.b16 %v203
    %v771 = vunpack.c.h.b16 %v203
    %v772 = vunpack.c.l.b16 %v204
    %v773 = vunpack.c.h.b16 %v204
    %v774 = vunpack.c.l.b16 %v205
    %v775 = vunpack.c.h.b16 %v205
    %v776 = vunpack.c.l.b16 %v206
    %v777 = vunpack.c.h.b16 %v206
    %v778 = vunpack.c.l.b16 %v207
    %v779 = vunpack.c.h.b16 %v207
    %v780 = vunpack.c.l.b16 %v208
    %v781 = vunpack.c.h.b16 %v208
    %v782 = vunpack.c.l.b16 %v209
    %v783 = vunpack.c.h.b16 %v209
    %v784 = vunpack.c.l.b16 %v210
    %v785 = vunpack.c.h.b16 %v210
    %v786 = vunpack.c.l.b16 %v211
    %v787 = vunpack.c.h.b16 %v211
    %v788 = vunpack.c.l.b16 %v212
    %v789 = vunpack.c.h.b16 %v212
    %v790 = vunpack.c.l.b16 %v213
    %v791 = vunpack.c.h.b16 %v213
    %v792 = vunpack.c.l.b16 %v214
    %v793 = vunpack.c.h.b16 %v214
    %v794 = vunpack.c.l.b16 %v215
    %v795 = vunpack.c.h.b16 %v215
    %v796 = vunpack.c.l.b16 %v216
    %v797 = vunpack.c.h.b16 %v216
    %v798 = vunpack.c.l.b16 %v217
    %v799 = vunpack.c.h.b16 %v217
    %v800 = vunpack.c.l.b16 %v218
    %v801 = vunpack.c.h.b16 %v218
    %v802 = vunpack.c.l.b16 %v219
    %v803 = vunpack.c.h.b16 %v219
    %v804 = vunpack.c.l.b16 %v220
    %v805 = vunpack.c.h.b16 %v220
    %v806 = vunpack.c.l.b16 %v221
    %v807 = vunpack.c.h.b16 %v221
    %v808 = vunpack.c.l.b16 %v222
    %v809 = vunpack.c.h.b16 %v222
    %v810 = vunpack.c.l.b16 %v223
    %v811 = vunpack.c.h.b16 %v223
    %v812 = vunpack.c.l.b16 %v224
    %v813 = vunpack.c.h.b16 %v224
    %v814 = vunpack.c.l.b16 %v225
    %v815 = vunpack.c.h.b16 %v225
    %v816 = vunpack.c.l.b16 %v226
    %v817 = vunpack.c.h.b16 %v226
    %v818 = vunpack.c.l.b16 %v227
    %v819 = vunpack.c.h.b16 %v227
    %v820 = vunpack.c.l.b16 %v228
    %v821 = vunpack.c.h.b16 %v228
    %v822 = vunpack.c.l.b16 %v229
    %v823 = vunpack.c.h.b16 %v229
    %v824 = vunpack.c.l.b16 %v230
    %v825 = vunpack.c.h.b16 %v230
    %v826 = vunpack.c.l.b16 %v231
    %v827 = vunpack.c.h.b16 %v231
    %v828 = vunpack.c.l.b16 %v232
    %v829 = vunpack.c.h.b16 %v232
    %v830 = vpack.c.b16 %v450, %v446
    %v831 = vpack.c.b16 %v451, %v447
    %v832 = vpack.c.b16 %v452, %v448
    %v833 = vpack.c.b16 %v453, %v449
    %v834 = vpack.c.b16 %v458, %v454
    %v835 = vpack.c.b16 %v459, %v455
    %v836 = vpack.c.b16 %v460, %v456
    %v837 = vpack.c.b16 %v461, %v457
    %v838 = vpack.c.b16 %v466, %v462
    %v839 = vpack.c.b16 %v467, %v463
    %v840 = vpack.c.b16 %v468, %v464
    %v841 = vpack.c.b16 %v469, %v465
    %v842 = vpack.c.b16 %v474, %v470
    %v843 = vpack.c.b16 %v475, %v471
    %v844 = vpack.c.b16 %v476, %v472
    %v845 = vpack.c.b16 %v477, %v473
    %v846 = vpack.c.b16 %v482, %v478
    %v847 = vpack.c.b16 %v483, %v479
    %v848 = vpack.c.b16 %v484, %v480
    %v849 = vpack.c.b16 %v485, %v481
    %v850 = vpack.c.b16 %v490, %v486
    %v851 = vpack.c.b16 %v491, %v487
    %v852 = vpack.c.b16 %v492, %v488
    %v853 = vpack.c.b16 %v493, %v489
    %v854 = vpack.c.b16 %v498, %v494
    %v855 = vpack.c.b16 %v499, %v495
    %v856 = vpack.c.b16 %v500, %v496
    %v857 = vpack.c.b16 %v501, %v497
    %v858 = vpack.c.b16 %v506, %v502
    %v859 = vpack.c.b16 %v507, %v503
    %v860 = vpack.c.b16 %v508, %v504
    %v861 = vpack.c.b16 %v509, %v505
    %v862 = vpack.c.b16 %v514, %v510
    %v863 = vpack.c.b16 %v515, %v511
    %v864 = vpack.c.b16 %v516, %v512
    %v865 = vpack.c.b16 %v517, %v513
    %v866 = vpack.c.b16 %v522, %v518
    %v867 = vpack.c.b16 %v523, %v519
    %v868 = vpack.c.b16 %v524, %v520
    %v869 = vpack.c.b16 %v525, %v521
    %v870 = vpack.c.b16 %v530, %v526
    %v871 = vpack.c.b16 %v531, %v527
    %v872 = vpack.c.b16 %v532, %v528
    %v873 = vpack.c.b16 %v533, %v529
    %v874 = vpack.c.b16 %v538, %v534
    %v875 = vpack.c.b16 %v539, %v535
    %v876 = vpack.c.b16 %v540, %v536
    %v877 = vpack.c.b16 %v541, %v537
    %v878 = vpack.c.b16 %v546, %v542
    %v879 = vpack.c.b16 %v547, %v543
    %v880 = vpack.c.b16 %v548, %v544
    %v881 = vpack.c.b16 %v549, %v545
    %v882 = vpack.c.b16 %v554, %v550
    %v883 = vpack.c.b16 %v555, %v551
    %v884 = vpack.c.b16 %v556, %v552
    %v885 = vpack.c.b16 %v557, %v553
    %v886 = vpack.c.b16 %v562, %v558
    %v887 = vpack.c.b16 %v563, %v559
    %v888 = vpack.c.b16 %v564, %v560
    %v889 = vpack.c.b16 %v565, %v561
    %v890 = vpack.c.b16 %v570, %v566
    %v891 = vpack.c.b16 %v571, %v567
    %v892 = vpack.c.b16 %v572, %v568
    %v893 = vpack.c.b16 %v573, %v569
    %v894 = vpack.c.b16 %v578, %v574
    %v895 = vpack.c.b16 %v579, %v575
    %v896 = vpack.c.b16 %v580, %v576
    %v897 = vpack.c.b16 %v581, %v577
    %v898 = vpack.c.b16 %v586, %v582
    %v899 = vpack.c.b16 %v587, %v583
    %v900 = vpack.c.b16 %v588, %v584
    %v901 = vpack.c.b16 %v589, %v585
    %v902 = vpack.c.b16 %v594, %v590
    %v903 = vpack.c.b16 %v595, %v591
    %v904 = vpack.c.b16 %v596, %v592
    %v905 = vpack.c.b16 %v597, %v593
    %v906 = vpack.c.b16 %v602, %v598
    %v907 = vpack.c.b16 %v603, %v599
    %v908 = vpack.c.b16 %v604, %v600
    %v909 = vpack.c.b16 %v605, %v601
    %v910 = vpack.c.b16 %v610, %v606
    %v911 = vpack.c.b16 %v611, %v607
    %v912 = vpack.c.b16 %v612, %v608
    %v913 = vpack.c.b16 %v613, %v609
    %v914 = vpack.c.b16 %v618, %v614
    %v915 = vpack.c.b16 %v619, %v615
    %v916 = vpack.c.b16 %v620, %v616
    %v917 = vpack.c.b16 %v621, %v617
    %v918 = vpack.c.b16 %v626, %v622
    %v919 = vpack.c.b16 %v627, %v623
    %v920 = vpack.c.b16 %v628, %v624
    %v921 = vpack.c.b16 %v629, %v625
    %v922 = vpack.c.b16 %v634, %v630
    %v923 = vpack.c.b16 %v635, %v631
    %v924 = vpack.c.b16 %v636, %v632
    %v925 = vpack.c.b16 %v637, %v633
    %v926 = vpack.c.b16 %v642, %v638
    %v927 = vpack.c.b16 %v643, %v639
    %v928 = vpack.c.b16 %v644, %v640
    %v929 = vpack.c.b16 %v645, %v641
    %v930 = vpack.c.b16 %v650, %v646
    %v931 = vpack.c.b16 %v651, %v647
    %v932 = vpack.c.b16 %v652, %v648
    %v933 = vpack.c.b16 %v653, %v649
    %v934 = vpack.c.b16 %v658, %v654
    %v935 = vpack.c.b16 %v659, %v655
    %v936 = vpack.c.b16 %v660, %v656
    %v937 = vpack.c.b16 %v661, %v657
    %v938 = vpack.c.b16 %v666, %v662
    %v939 = vpack.c.b16 %v667, %v663
    %v940 = vpack.c.b16 %v668, %v664
    %v941 = vpack.c.b16 %v669, %v665
    %v942 = vpack.c.b16 %v674, %v670
    %v943 = vpack.c.b16 %v675, %v671
    %v944 = vpack.c.b16 %v676, %v672
    %v945 = vpack.c.b16 %v677, %v673
    %v946 = vpack.c.b16 %v682, %v678
    %v947 = vpack.c.b16 %v683, %v679
    %v948 = vpack.c.b16 %v684, %v680
    %v949 = vpack.c.b16 %v685, %v681
    %v950 = vpack.c.b16 %v690, %v686
    %v951 = vpack.c.b16 %v691, %v687
    %v952 = vpack.c.b16 %v692, %v688
    %v953 = vpack.c.b16 %v693, %v689
    %v954 = vpack.c.b16 %v698, %v694
    %v955 = vpack.c.b16 %v699, %v695
    %v956 = vpack.c.b16 %v700, %v696
    %v957 = vpack.c.b16 %v701, %v697
    %v958 = vpack.c.b16 %v706, %v702
    %v959 = vpack.c.b16 %v707, %v703
    %v960 = vpack.c.b16 %v708, %v704
    %v961 = vpack.c.b16 %v709, %v705
    %v962 = vpack.c.b16 %v714, %v710
    %v963 = vpack.c.b16 %v715, %v711
    %v964 = vpack.c.b16 %v716, %v712
    %v965 = vpack.c.b16 %v717, %v713
    %v966 = vpack.c.b16 %v722, %v718
    %v967 = vpack.c.b16 %v723, %v719
    %v968 = vpack.c.b16 %v724, %v720
    %v969 = vpack.c.b16 %v725, %v721
    %v970 = vpack.c.b16 %v730, %v726
    %v971 = vpack.c.b16 %v731, %v727
    %v972 = vpack.c.b16 %v732, %v728
    %v973 = vpack.c.b16 %v733, %v729
    %v974 = vpack.c.b16 %v738, %v734
    %v975 = vpack.c.b16 %v739, %v735
    %v976 = vpack.c.b16 %v740, %v736
    %v977 = vpack.c.b16 %v741, %v737
    %v978 = vpack.c.b16 %v746, %v742
    %v979 = vpack.c.b16 %v747, %v743
    %v980 = vpack.c.b16 %v748, %v744
    %v981 = vpack.c.b16 %v749, %v745
    %v982 = vpack.c.b16 %v754, %v750
    %v983 = vpack.c.b16 %v755, %v751
    %v984 = vpack.c.b16 %v756, %v752
    %v985 = vpack.c.b16 %v757, %v753
    %v986 = vpack.c.b16 %v762, %v758
    %v987 = vpack.c.b16 %v763, %v759
    %v988 = vpack.c.b16 %v764, %v760
    %v989 = vpack.c.b16 %v765, %v761
    %v990 = vpack.c.b16 %v770, %v766
    %v991 = vpack.c.b16 %v771, %v767
    %v992 = vpack.c.b16 %v772, %v768
    %v993 = vpack.c.b16 %v773, %v769
    %v994 = vpack.c.b16 %v778, %v774
    %v995 = vpack.c.b16 %v779, %v775
    %v996 = vpack.c.b16 %v780, %v776
    %v997 = vpack.c.b16 %v781, %v777
    %v998 = vpack.c.b16 %v786, %v782
    %v999 = vpack.c.b16 %v787, %v783
    %v1000 = vpack.c.b16 %v788, %v784
    %v1001 = vpack.c.b16 %v789, %v785
    %v1002 = vpack.c.b16 %v794, %v790
    %v1003 = vpack.c.b16 %v795, %v791
    %v1004 = vpack.c.b16 %v796, %v792
    %v1005 = vpack.c.b16 %v797, %v793
    %v1006 = vpack.c.b16 %v802, %v798
    %v1007 = vpack.c.b16 %v803, %v799
    %v1008 = vpack.c.b16 %v804, %v800
    %v1009 = vpack.c.b16 %v805, %v801
    %v1010 = vpack.c.b16 %v810, %v806
    %v1011 = vpack.c.b16 %v811, %v807
    %v1012 = vpack.c.b16 %v812, %v808
    %v1013 = vpack.c.b16 %v813, %v809
    %v1014 = vpack.c.b16 %v818, %v814
    %v1015 = vpack.c.b16 %v819, %v815
    %v1016 = vpack.c.b16 %v820, %v816
    %v1017 = vpack.c.b16 %v821, %v817
    %v1018 = vpack.c.b16 %v826, %v822
    %v1019 = vpack.c.b16 %v827, %v823
    %v1020 = vpack.c.b16 %v828, %v824
    %v1021 = vpack.c.b16 %v829, %v825
    %1214 = vmatprep.subr.bf16.mxu0 %v831
    %1215 = vmatpush1.bf16.msra.mxu0 %v830
    %1216 = vmatprep.subr.bf16.mxu0 %v835
    %1217 = vmatpush1.bf16.msra.mxu0 %v834
    %1218 = vmatprep.subr.bf16.mxu0 %v839
    %1219 = vmatpush1.bf16.msra.mxu0 %v838
    %1220 = vmatprep.subr.bf16.mxu0 %v843
    %1221 = vmatpush1.bf16.msra.mxu0 %v842
    %1222 = vmatprep.subr.bf16.mxu0 %v847
    %1223 = vmatpush1.bf16.msra.mxu0 %v846
    %1224 = vmatprep.subr.bf16.mxu0 %v851
    %1225 = vmatpush1.bf16.msra.mxu0 %v850
    %1226 = vmatprep.subr.bf16.mxu0 %v855
    %1227 = vmatpush1.bf16.msra.mxu0 %v854
    %1228 = vmatprep.subr.bf16.mxu0 %v859
    %1229 = vmatpush1.bf16.msra.mxu0 %v858
    %1230 = vmatprep.subr.bf16.mxu0 %v863
    %1231 = vmatpush1.bf16.msra.mxu0 %v862
    %1232 = vmatprep.subr.bf16.mxu0 %v867
    %1233 = vmatpush1.bf16.msra.mxu0 %v866
    %1234 = vmatprep.subr.bf16.mxu0 %v871
    %1235 = vmatpush1.bf16.msra.mxu0 %v870
    %1236 = vmatprep.subr.bf16.mxu0 %v875
    %1237 = vmatpush1.bf16.msra.mxu0 %v874
    %1238 = vmatprep.subr.bf16.mxu0 %v879
    %1239 = vmatpush1.bf16.msra.mxu0 %v878
    %1240 = vmatprep.subr.bf16.mxu0 %v883
    %1241 = vmatpush1.bf16.msra.mxu0 %v882
    %1242 = vmatprep.subr.bf16.mxu0 %v887
    %1243 = vmatpush1.bf16.msra.mxu0 %v886
    %1244 = vmatprep.subr.bf16.mxu0 %v891
    %1245 = vmatpush1.bf16.msra.mxu0 %v890
    %1246 = vmatprep.mubr.bf16.mxu0 %v243
    %1247 = vmatmul.mubr.bf16.gmra.mrb[0].mxu0 %v242
    %v1248 = vpop.f32.mrb[0].mxu0
    %v1249 = vadd.f32 0.0, %v1248
    %v1250 = vpop.f32.mrb[0].mxu0
    %v1251 = vadd.f32 0.0, %v1250
    %v1252 = vpop.f32.mrb[0].mxu0
    %v1253 = vpop.f32.mrb[0].mxu0
    %1254 = vdwg.mxu0
    %1255 = vmatprep.subr.bf16.mxu0 %v895
    %1256 = vmatpush1.bf16.msra.mxu0 %v894
    %1257 = vmatprep.subr.bf16.mxu0 %v899
    %1258 = vmatpush1.bf16.msra.mxu0 %v898
    %1259 = vmatprep.subr.bf16.mxu0 %v903
    %1260 = vmatpush1.bf16.msra.mxu0 %v902
    %1261 = vmatprep.subr.bf16.mxu0 %v907
    %1262 = vmatpush1.bf16.msra.mxu0 %v906
    %1263 = vmatprep.subr.bf16.mxu0 %v911
    %1264 = vmatpush1.bf16.msra.mxu0 %v910
    %1265 = vmatprep.subr.bf16.mxu0 %v915
    %1266 = vmatpush1.bf16.msra.mxu0 %v914
    %1267 = vmatprep.subr.bf16.mxu0 %v919
    %1268 = vmatpush1.bf16.msra.mxu0 %v918
    %1269 = vmatprep.subr.bf16.mxu0 %v923
    %1270 = vmatpush1.bf16.msra.mxu0 %v922
    %1271 = vmatprep.subr.bf16.mxu0 %v927
    %1272 = vmatpush1.bf16.msra.mxu0 %v926
    %1273 = vmatprep.subr.bf16.mxu0 %v931
    %1274 = vmatpush1.bf16.msra.mxu0 %v930
    %1275 = vmatprep.subr.bf16.mxu0 %v935
    %1276 = vmatpush1.bf16.msra.mxu0 %v934
    %1277 = vmatprep.subr.bf16.mxu0 %v939
    %1278 = vmatpush1.bf16.msra.mxu0 %v938
    %1279 = vmatprep.subr.bf16.mxu0 %v943
    %1280 = vmatpush1.bf16.msra.mxu0 %v942
    %1281 = vmatprep.subr.bf16.mxu0 %v947
    %1282 = vmatpush1.bf16.msra.mxu0 %v946
    %1283 = vmatprep.subr.bf16.mxu0 %v951
    %1284 = vmatpush1.bf16.msra.mxu0 %v950
    %1285 = vmatprep.subr.bf16.mxu0 %v955
    %1286 = vmatpush1.bf16.msra.mxu0 %v954
    %1287 = vmatprep.mubr.bf16.mxu0 %v245
    %1288 = vmatmul.mubr.bf16.gmra.mrb[0].mxu0 %v244
    %v1289 = vpop.f32.mrb[0].mxu0
    %v1290 = vadd.f32 %v1249, %v1289
    %v1291 = vpop.f32.mrb[0].mxu0
    %v1292 = vadd.f32 %v1251, %v1291
    %v1293 = vpop.f32.mrb[0].mxu0
    %v1294 = vpop.f32.mrb[0].mxu0
    %1295 = vdwg.mxu0
    %1296 = vmatprep.subr.bf16.mxu0 %v959
    %1297 = vmatpush1.bf16.msra.mxu0 %v958
    %1298 = vmatprep.subr.bf16.mxu0 %v963
    %1299 = vmatpush1.bf16.msra.mxu0 %v962
    %1300 = vmatprep.subr.bf16.mxu0 %v967
    %1301 = vmatpush1.bf16.msra.mxu0 %v966
    %1302 = vmatprep.subr.bf16.mxu0 %v971
    %1303 = vmatpush1.bf16.msra.mxu0 %v970
    %1304 = vmatprep.subr.bf16.mxu0 %v975
    %1305 = vmatpush1.bf16.msra.mxu0 %v974
    %1306 = vmatprep.subr.bf16.mxu0 %v979
    %1307 = vmatpush1.bf16.msra.mxu0 %v978
    %1308 = vmatprep.subr.bf16.mxu0 %v983
    %1309 = vmatpush1.bf16.msra.mxu0 %v982
    %1310 = vmatprep.subr.bf16.mxu0 %v987
    %1311 = vmatpush1.bf16.msra.mxu0 %v986
    %1312 = vmatprep.subr.bf16.mxu0 %v991
    %1313 = vmatpush1.bf16.msra.mxu0 %v990
    %1314 = vmatprep.subr.bf16.mxu0 %v995
    %1315 = vmatpush1.bf16.msra.mxu0 %v994
    %1316 = vmatprep.subr.bf16.mxu0 %v999
    %1317 = vmatpush1.bf16.msra.mxu0 %v998
    %1318 = vmatprep.subr.bf16.mxu0 %v1003
    %1319 = vmatpush1.bf16.msra.mxu0 %v1002
    %1320 = vmatprep.subr.bf16.mxu0 %v1007
    %1321 = vmatpush1.bf16.msra.mxu0 %v1006
    %1322 = vmatprep.subr.bf16.mxu0 %v1011
    %1323 = vmatpush1.bf16.msra.mxu0 %v1010
    %1324 = vmatprep.subr.bf16.mxu0 %v1015
    %1325 = vmatpush1.bf16.msra.mxu0 %v1014
    %1326 = vmatprep.subr.bf16.mxu0 %v1019
    %1327 = vmatpush1.bf16.msra.mxu0 %v1018
    %1328 = vmatprep.mubr.bf16.mxu0 %v247
    %1329 = vmatmul.mubr.bf16.gmra.mrb[0].mxu0 %v246
    %v1330 = vpop.f32.mrb[0].mxu0
    %v1331 = vadd.f32 %v1290, %v1330
    %v1332 = vpop.f32.mrb[0].mxu0
    %v1333 = vadd.f32 %v1292, %v1332
    %v1334 = vpop.f32.mrb[0].mxu0
    %v1335 = vpop.f32.mrb[0].mxu0
    %1336 = vdwg.mxu0
    %1337 = vmatprep.subr.bf16.mxu0 %v833
    %1338 = vmatpush1.bf16.msra.mxu0 %v832
    %1339 = vmatprep.subr.bf16.mxu0 %v837
    %1340 = vmatpush1.bf16.msra.mxu0 %v836
    %1341 = vmatprep.subr.bf16.mxu0 %v841
    %1342 = vmatpush1.bf16.msra.mxu0 %v840
    %1343 = vmatprep.subr.bf16.mxu0 %v845
    %1344 = vmatpush1.bf16.msra.mxu0 %v844
    %1345 = vmatprep.subr.bf16.mxu0 %v849
    %1346 = vmatpush1.bf16.msra.mxu0 %v848
    %1347 = vmatprep.subr.bf16.mxu0 %v853
    %1348 = vmatpush1.bf16.msra.mxu0 %v852
    %1349 = vmatprep.subr.bf16.mxu0 %v857
    %1350 = vmatpush1.bf16.msra.mxu0 %v856
    %1351 = vmatprep.subr.bf16.mxu0 %v861
    %1352 = vmatpush1.bf16.msra.mxu0 %v860
    %1353 = vmatprep.subr.bf16.mxu0 %v865
    %1354 = vmatpush1.bf16.msra.mxu0 %v864
    %1355 = vmatprep.subr.bf16.mxu0 %v869
    %1356 = vmatpush1.bf16.msra.mxu0 %v868
    %1357 = vmatprep.subr.bf16.mxu0 %v873
    %1358 = vmatpush1.bf16.msra.mxu0 %v872
    %1359 = vmatprep.subr.bf16.mxu0 %v877
    %1360 = vmatpush1.bf16.msra.mxu0 %v876
    %1361 = vmatprep.subr.bf16.mxu0 %v881
    %1362 = vmatpush1.bf16.msra.mxu0 %v880
    %1363 = vmatprep.subr.bf16.mxu0 %v885
    %1364 = vmatpush1.bf16.msra.mxu0 %v884
    %1365 = vmatprep.subr.bf16.mxu0 %v889
    %1366 = vmatpush1.bf16.msra.mxu0 %v888
    %1367 = vmatprep.subr.bf16.mxu0 %v893
    %1368 = vmatpush1.bf16.msra.mxu0 %v892
    %1369 = vmatprep.mubr.bf16.mxu0 %v243
    %1370 = vmatmul.mubr.bf16.gmra.mrb[0].mxu0 %v242
    %v1371 = vpop.f32.mrb[0].mxu0
    %v1372 = vadd.f32 0.0, %v1371
    %v1373 = vpop.f32.mrb[0].mxu0
    %v1374 = vadd.f32 0.0, %v1373
    %v1375 = vpop.f32.mrb[0].mxu0
    %v1376 = vpop.f32.mrb[0].mxu0
    %1377 = vdwg.mxu0
    %1378 = vmatprep.subr.bf16.mxu0 %v897
    %1379 = vmatpush1.bf16.msra.mxu0 %v896
    %1380 = vmatprep.subr.bf16.mxu0 %v901
    %1381 = vmatpush1.bf16.msra.mxu0 %v900
    %1382 = vmatprep.subr.bf16.mxu0 %v905
    %1383 = vmatpush1.bf16.msra.mxu0 %v904
    %1384 = vmatprep.subr.bf16.mxu0 %v909
    %1385 = vmatpush1.bf16.msra.mxu0 %v908
    %1386 = vmatprep.subr.bf16.mxu0 %v913
    %1387 = vmatpush1.bf16.msra.mxu0 %v912
    %1388 = vmatprep.subr.bf16.mxu0 %v917
    %1389 = vmatpush1.bf16.msra.mxu0 %v916
    %1390 = vmatprep.subr.bf16.mxu0 %v921
    %1391 = vmatpush1.bf16.msra.mxu0 %v920
    %1392 = vmatprep.subr.bf16.mxu0 %v925
    %1393 = vmatpush1.bf16.msra.mxu0 %v924
    %1394 = vmatprep.subr.bf16.mxu0 %v929
    %1395 = vmatpush1.bf16.msra.mxu0 %v928
    %1396 = vmatprep.subr.bf16.mxu0 %v933
    %1397 = vmatpush1.bf16.msra.mxu0 %v932
    %1398 = vmatprep.subr.bf16.mxu0 %v937
    %1399 = vmatpush1.bf16.msra.mxu0 %v936
    %1400 = vmatprep.subr.bf16.mxu0 %v941
    %1401 = vmatpush1.bf16.msra.mxu0 %v940
    %1402 = vmatprep.subr.bf16.mxu0 %v945
    %1403 = vmatpush1.bf16.msra.mxu0 %v944
    %1404 = vmatprep.subr.bf16.mxu0 %v949
    %1405 = vmatpush1.bf16.msra.mxu0 %v948
    %1406 = vmatprep.subr.bf16.mxu0 %v953
    %1407 = vmatpush1.bf16.msra.mxu0 %v952
    %1408 = vmatprep.subr.bf16.mxu0 %v957
    %1409 = vmatpush1.bf16.msra.mxu0 %v956
    %1410 = vmatprep.mubr.bf16.mxu0 %v245
    %1411 = vmatmul.mubr.bf16.gmra.mrb[0].mxu0 %v244
    %v1412 = vpop.f32.mrb[0].mxu0
    %v1413 = vadd.f32 %v1372, %v1412
    %v1414 = vpop.f32.mrb[0].mxu0
    %v1415 = vadd.f32 %v1374, %v1414
    %v1416 = vpop.f32.mrb[0].mxu0
    %v1417 = vpop.f32.mrb[0].mxu0
    %1418 = vdwg.mxu0
    %1419 = vmatprep.subr.bf16.mxu0 %v961
    %1420 = vmatpush1.bf16.msra.mxu0 %v960
    %1421 = vmatprep.subr.bf16.mxu0 %v965
    %1422 = vmatpush1.bf16.msra.mxu0 %v964
    %1423 = vmatprep.subr.bf16.mxu0 %v969
    %1424 = vmatpush1.bf16.msra.mxu0 %v968
    %1425 = vmatprep.subr.bf16.mxu0 %v973
    %1426 = vmatpush1.bf16.msra.mxu0 %v972
    %1427 = vmatprep.subr.bf16.mxu0 %v977
    %1428 = vmatpush1.bf16.msra.mxu0 %v976
    %1429 = vmatprep.subr.bf16.mxu0 %v981
    %1430 = vmatpush1.bf16.msra.mxu0 %v980
    %1431 = vmatprep.subr.bf16.mxu0 %v985
    %1432 = vmatpush1.bf16.msra.mxu0 %v984
    %1433 = vmatprep.subr.bf16.mxu0 %v989
    %1434 = vmatpush1.bf16.msra.mxu0 %v988
    %1435 = vmatprep.subr.bf16.mxu0 %v993
    %1436 = vmatpush1.bf16.msra.mxu0 %v992
    %1437 = vmatprep.subr.bf16.mxu0 %v997
    %1438 = vmatpush1.bf16.msra.mxu0 %v996
    %1439 = vmatprep.subr.bf16.mxu0 %v1001
    %1440 = vmatpush1.bf16.msra.mxu0 %v1000
    %1441 = vmatprep.subr.bf16.mxu0 %v1005
    %1442 = vmatpush1.bf16.msra.mxu0 %v1004
    %1443 = vmatprep.subr.bf16.mxu0 %v1009
    %1444 = vmatpush1.bf16.msra.mxu0 %v1008
    %1445 = vmatprep.subr.bf16.mxu0 %v1013
    %1446 = vmatpush1.bf16.msra.mxu0 %v1012
    %1447 = vmatprep.subr.bf16.mxu0 %v1017
    %1448 = vmatpush1.bf16.msra.mxu0 %v1016
    %1449 = vmatprep.subr.bf16.mxu0 %v1021
    %1450 = vmatpush1.bf16.msra.mxu0 %v1020
    %1451 = vmatprep.mubr.bf16.mxu0 %v247
    %1452 = vmatmul.mubr.bf16.gmra.mrb[0].mxu0 %v246
    %v1453 = vpop.f32.mrb[0].mxu0
    %v1454 = vadd.f32 %v1413, %v1453
    %v1455 = vpop.f32.mrb[0].mxu0
    %v1456 = vadd.f32 %v1415, %v1455
    %v1457 = vpop.f32.mrb[0].mxu0
    %v1458 = vpop.f32.mrb[0].mxu0
    %1459 = vdwg.mxu0
    %v1460 = vpack.c.bf16 %v1331, %v1331
    %v1461 = vpack.c.bf16 %v1333, %v1333
    %v1462 = vpack.c.bf16 %v1454, %v1454
    %v1463 = vpack.c.bf16 %v1456, %v1456
    %v1464 = vlaneseq
    %v1465 = vand.u32 %v1464, 127
    %v1466 = vld [vmem:[%s5] sm:$0xff]
    %1467 = vset.pattern.permute.xlu0 0
    %1468 = vperm.xlu0 %1467, %v1466
    %v1469 = vpop.permute.xlu0 %1468
    %vm1470 = vcmp.eq.s32.totalorder %v1465, %v1469
    %v1471 = vsel %vm1470, 1, 0
    %v1472 = vcvt.s32.f32 %v1471
    %v1473 = vld [vmem:[%s2] sm:$0xf]
    %v1474 = vld [vmem:[%s2 + $0x4] sm:$0xf]
    %v1475 = vld [vmem:[%s2 + $0x8] sm:$0xf]
    %v1476 = vld [vmem:[%s2 + $0xc] sm:$0xf]
    %v1477 = vld [vmem:[%s2 + $0x10] sm:$0xf]
    %v1478 = vld [vmem:[%s2 + $0x14] sm:$0xf]
    %v1479 = vld [vmem:[%s2 + $0x18] sm:$0xf]
    %v1480 = vld [vmem:[%s2 + $0x1c] sm:$0xf]
    %v1481 = vld [vmem:[%s2 + $0x20] sm:$0xf]
    %v1482 = vld [vmem:[%s2 + $0x24] sm:$0xf]
    %v1483 = vld [vmem:[%s2 + $0x28] sm:$0xf]
    %v1484 = vld [vmem:[%s2 + $0x2c] sm:$0xf]
    %v1485 = vld [vmem:[%s2 + $0x30] sm:$0xf]
    %v1486 = vld [vmem:[%s2 + $0x34] sm:$0xf]
    %v1487 = vld [vmem:[%s2 + $0x38] sm:$0xf]
    %v1488 = vld [vmem:[%s2 + $0x3c] sm:$0xf]
    %v1489 = vld [vmem:[%s2 + $0x40] sm:$0xf]
    %v1490 = vld [vmem:[%s2 + $0x44] sm:$0xf]
    %v1491 = vld [vmem:[%s2 + $0x48] sm:$0xf]
    %v1492 = vld [vmem:[%s2 + $0x4c] sm:$0xf]
    %v1493 = vld [vmem:[%s2 + $0x50] sm:$0xf]
    %v1494 = vld [vmem:[%s2 + $0x54] sm:$0xf]
    %v1495 = vld [vmem:[%s2 + $0x58] sm:$0xf]
    %v1496 = vld [vmem:[%s2 + $0x5c] sm:$0xf]
    %v1497 = vld [vmem:[%s2 + $0x60] sm:$0xf]
    %v1498 = vld [vmem:[%s2 + $0x64] sm:$0xf]
    %v1499 = vld [vmem:[%s2 + $0x68] sm:$0xf]
    %v1500 = vld [vmem:[%s2 + $0x6c] sm:$0xf]
    %v1501 = vld [vmem:[%s2 + $0x70] sm:$0xf]
    %v1502 = vld [vmem:[%s2 + $0x74] sm:$0xf]
    %v1503 = vld [vmem:[%s2 + $0x78] sm:$0xf]
    %v1504 = vld [vmem:[%s2 + $0x7c] sm:$0xf]
    %v1505 = vld [vmem:[%s2 + $0x80] sm:$0xf]
    %v1506 = vld [vmem:[%s2 + $0x84] sm:$0xf]
    %v1507 = vld [vmem:[%s2 + $0x88] sm:$0xf]
    %v1508 = vld [vmem:[%s2 + $0x8c] sm:$0xf]
    %v1509 = vld [vmem:[%s2 + $0x90] sm:$0xf]
    %v1510 = vld [vmem:[%s2 + $0x94] sm:$0xf]
    %v1511 = vld [vmem:[%s2 + $0x98] sm:$0xf]
    %v1512 = vld [vmem:[%s2 + $0x9c] sm:$0xf]
    %v1513 = vld [vmem:[%s2 + $0xa0] sm:$0xf]
    %v1514 = vld [vmem:[%s2 + $0xa4] sm:$0xf]
    %v1515 = vld [vmem:[%s2 + $0xa8] sm:$0xf]
    %v1516 = vld [vmem:[%s2 + $0xac] sm:$0xf]
    %v1517 = vld [vmem:[%s2 + $0xb0] sm:$0xf]
    %v1518 = vld [vmem:[%s2 + $0xb4] sm:$0xf]
    %v1519 = vld [vmem:[%s2 + $0xb8] sm:$0xf]
    %v1520 = vld [vmem:[%s2 + $0xbc] sm:$0xf]
    %v1521 = vld [vmem:[%s2 + $0xc0] sm:$0xf]
    %v1522 = vld [vmem:[%s2 + $0xc4] sm:$0xf]
    %v1523 = vld [vmem:[%s2 + $0xc8] sm:$0xf]
    %v1524 = vld [vmem:[%s2 + $0xcc] sm:$0xf]
    %v1525 = vld [vmem:[%s2 + $0xd0] sm:$0xf]
    %v1526 = vld [vmem:[%s2 + $0xd4] sm:$0xf]
    %v1527 = vld [vmem:[%s2 + $0xd8] sm:$0xf]
    %v1528 = vld [vmem:[%s2 + $0xdc] sm:$0xf]
    %v1529 = vld [vmem:[%s2 + $0xe0] sm:$0xf]
    %v1530 = vld [vmem:[%s2 + $0xe4] sm:$0xf]
    %v1531 = vld [vmem:[%s2 + $0xe8] sm:$0xf]
    %v1532 = vld [vmem:[%s2 + $0xec] sm:$0xf]
    %v1533 = vld [vmem:[%s2 + $0xf0] sm:$0xf]
    %v1534 = vld [vmem:[%s2 + $0xf4] sm:$0xf]
    %v1535 = vld [vmem:[%s2 + $0xf8] sm:$0xf]
    %v1536 = vld [vmem:[%s2 + $0xfc] sm:$0xf]
    %v1601 = vunpack.c.l.b16 %v1473
    %v1602 = vunpack.c.l.b16 %v1474
    %v1603 = vunpack.c.l.b16 %v1475
    %v1604 = vunpack.c.l.b16 %v1476
    %v1605 = vunpack.c.l.b16 %v1477
    %v1606 = vunpack.c.l.b16 %v1478
    %v1607 = vunpack.c.l.b16 %v1479
    %v1608 = vunpack.c.l.b16 %v1480
    %v1609 = vunpack.c.l.b16 %v1481
    %v1610 = vunpack.c.l.b16 %v1482
    %v1611 = vunpack.c.l.b16 %v1483
    %v1612 = vunpack.c.l.b16 %v1484
    %v1613 = vunpack.c.l.b16 %v1485
    %v1614 = vunpack.c.l.b16 %v1486
    %v1615 = vunpack.c.l.b16 %v1487
    %v1616 = vunpack.c.l.b16 %v1488
    %v1617 = vunpack.c.l.b16 %v1489
    %v1618 = vunpack.c.l.b16 %v1490
    %v1619 = vunpack.c.l.b16 %v1491
    %v1620 = vunpack.c.l.b16 %v1492
    %v1621 = vunpack.c.l.b16 %v1493
    %v1622 = vunpack.c.l.b16 %v1494
    %v1623 = vunpack.c.l.b16 %v1495
    %v1624 = vunpack.c.l.b16 %v1496
    %v1625 = vunpack.c.l.b16 %v1497
    %v1626 = vunpack.c.l.b16 %v1498
    %v1627 = vunpack.c.l.b16 %v1499
    %v1628 = vunpack.c.l.b16 %v1500
    %v1629 = vunpack.c.l.b16 %v1501
    %v1630 = vunpack.c.l.b16 %v1502
    %v1631 = vunpack.c.l.b16 %v1503
    %v1632 = vunpack.c.l.b16 %v1504
    %v1633 = vunpack.c.l.b16 %v1505
    %v1634 = vunpack.c.l.b16 %v1506
    %v1635 = vunpack.c.l.b16 %v1507
    %v1636 = vunpack.c.l.b16 %v1508
    %v1637 = vunpack.c.l.b16 %v1509
    %v1638 = vunpack.c.l.b16 %v1510
    %v1639 = vunpack.c.l.b16 %v1511
    %v1640 = vunpack.c.l.b16 %v1512
    %v1641 = vunpack.c.l.b16 %v1513
    %v1642 = vunpack.c.l.b16 %v1514
    %v1643 = vunpack.c.l.b16 %v1515
    %v1644 = vunpack.c.l.b16 %v1516
    %v1645 = vunpack.c.l.b16 %v1517
    %v1646 = vunpack.c.l.b16 %v1518
    %v1647 = vunpack.c.l.b16 %v1519
    %v1648 = vunpack.c.l.b16 %v1520
    %v1649 = vunpack.c.l.b16 %v1521
    %v1650 = vunpack.c.l.b16 %v1522
    %v1651 = vunpack.c.l.b16 %v1523
    %v1652 = vunpack.c.l.b16 %v1524
    %v1653 = vunpack.c.l.b16 %v1525
    %v1654 = vunpack.c.l.b16 %v1526
    %v1655 = vunpack.c.l.b16 %v1527
    %v1656 = vunpack.c.l.b16 %v1528
    %v1657 = vunpack.c.l.b16 %v1529
    %v1658 = vunpack.c.l.b16 %v1530
    %v1659 = vunpack.c.l.b16 %v1531
    %v1660 = vunpack.c.l.b16 %v1532
    %v1661 = vunpack.c.l.b16 %v1533
    %v1662 = vunpack.c.l.b16 %v1534
    %v1663 = vunpack.c.l.b16 %v1535
    %v1664 = vunpack.c.l.b16 %v1536
    %v1665 = vpack.c.b16 %v1602, %v1601
    %v1666 = vpack.c.b16 %v1604, %v1603
    %v1667 = vpack.c.b16 %v1606, %v1605
    %v1668 = vpack.c.b16 %v1608, %v1607
    %v1669 = vpack.c.b16 %v1610, %v1609
    %v1670 = vpack.c.b16 %v1612, %v1611
    %v1671 = vpack.c.b16 %v1614, %v1613
    %v1672 = vpack.c.b16 %v1616, %v1615
    %v1673 = vpack.c.b16 %v1618, %v1617
    %v1674 = vpack.c.b16 %v1620, %v1619
    %v1675 = vpack.c.b16 %v1622, %v1621
    %v1676 = vpack.c.b16 %v1624, %v1623
    %v1677 = vpack.c.b16 %v1626, %v1625
    %v1678 = vpack.c.b16 %v1628, %v1627
    %v1679 = vpack.c.b16 %v1630, %v1629
    %v1680 = vpack.c.b16 %v1632, %v1631
    %v1681 = vpack.c.b16 %v1634, %v1633
    %v1682 = vpack.c.b16 %v1636, %v1635
    %v1683 = vpack.c.b16 %v1638, %v1637
    %v1684 = vpack.c.b16 %v1640, %v1639
    %v1685 = vpack.c.b16 %v1642, %v1641
    %v1686 = vpack.c.b16 %v1644, %v1643
    %v1687 = vpack.c.b16 %v1646, %v1645
    %v1688 = vpack.c.b16 %v1648, %v1647
    %v1689 = vpack.c.b16 %v1650, %v1649
    %v1690 = vpack.c.b16 %v1652, %v1651
    %v1691 = vpack.c.b16 %v1654, %v1653
    %v1692 = vpack.c.b16 %v1656, %v1655
    %v1693 = vpack.c.b16 %v1658, %v1657
    %v1694 = vpack.c.b16 %v1660, %v1659
    %v1695 = vpack.c.b16 %v1662, %v1661
    %v1696 = vpack.c.b16 %v1664, %v1663
    %1729 = vmatprep.subr.bf16.mxu0 0
    %1730 = vmatpush1.bf16.msra.mxu0 %v1665
    %1731 = vmatprep.subr.bf16.mxu0 0
    %1732 = vmatpush1.bf16.msra.mxu0 %v1666
    %1733 = vmatprep.subr.bf16.mxu0 0
    %1734 = vmatpush1.bf16.msra.mxu0 %v1667
    %1735 = vmatprep.subr.bf16.mxu0 0
    %1736 = vmatpush1.bf16.msra.mxu0 %v1668
    %1737 = vmatprep.subr.bf16.mxu0 0
    %1738 = vmatpush1.bf16.msra.mxu0 %v1669
    %1739 = vmatprep.subr.bf16.mxu0 0
    %1740 = vmatpush1.bf16.msra.mxu0 %v1670
    %1741 = vmatprep.subr.bf16.mxu0 0
    %1742 = vmatpush1.bf16.msra.mxu0 %v1671
    %1743 = vmatprep.subr.bf16.mxu0 0
    %1744 = vmatpush1.bf16.msra.mxu0 %v1672
    %1745 = vmatprep.subr.bf16.mxu0 0
    %1746 = vmatpush1.bf16.msra.mxu0 %v1673
    %1747 = vmatprep.subr.bf16.mxu0 0
    %1748 = vmatpush1.bf16.msra.mxu0 %v1674
    %1749 = vmatprep.subr.bf16.mxu0 0
    %1750 = vmatpush1.bf16.msra.mxu0 %v1675
    %1751 = vmatprep.subr.bf16.mxu0 0
    %1752 = vmatpush1.bf16.msra.mxu0 %v1676
    %1753 = vmatprep.subr.bf16.mxu0 0
    %1754 = vmatpush1.bf16.msra.mxu0 %v1677
    %1755 = vmatprep.subr.bf16.mxu0 0
    %1756 = vmatpush1.bf16.msra.mxu0 %v1678
    %1757 = vmatprep.subr.bf16.mxu0 0
    %1758 = vmatpush1.bf16.msra.mxu0 %v1679
    %1759 = vmatprep.subr.bf16.mxu0 0
    %1760 = vmatpush1.bf16.msra.mxu0 %v1680
    %1761 = vmatprep.mubr.bf16.mxu0 %v1461
    %1762 = vmatmul.mubr.bf16.gmra.mrb[0].mxu0 %v1460
    %v1763 = vpop.f32.mrb[0].mxu0
    %v1764 = vadd.f32 0.0, %v1763
    %v1765 = vpop.f32.mrb[0].mxu0
    %v1766 = vpop.f32.mrb[0].mxu0
    %v1767 = vpop.f32.mrb[0].mxu0
    %1768 = vdwg.mxu0
    %1769 = vmatprep.subr.bf16.mxu0 0
    %1770 = vmatpush1.bf16.msra.mxu0 %v1681
    %1771 = vmatprep.subr.bf16.mxu0 0
    %1772 = vmatpush1.bf16.msra.mxu0 %v1682
    %1773 = vmatprep.subr.bf16.mxu0 0
    %1774 = vmatpush1.bf16.msra.mxu0 %v1683
    %1775 = vmatprep.subr.bf16.mxu0 0
    %1776 = vmatpush1.bf16.msra.mxu0 %v1684
    %1777 = vmatprep.subr.bf16.mxu0 0
    %1778 = vmatpush1.bf16.msra.mxu0 %v1685
    %1779 = vmatprep.subr.bf16.mxu0 0
    %1780 = vmatpush1.bf16.msra.mxu0 %v1686
    %1781 = vmatprep.subr.bf16.mxu0 0
    %1782 = vmatpush1.bf16.msra.mxu0 %v1687
    %1783 = vmatprep.subr.bf16.mxu0 0
    %1784 = vmatpush1.bf16.msra.mxu0 %v1688
    %1785 = vmatprep.subr.bf16.mxu0 0
    %1786 = vmatpush1.bf16.msra.mxu0 %v1689
    %1787 = vmatprep.subr.bf16.mxu0 0
    %1788 = vmatpush1.bf16.msra.mxu0 %v1690
    %1789 = vmatprep.subr.bf16.mxu0 0
    %1790 = vmatpush1.bf16.msra.mxu0 %v1691
    %1791 = vmatprep.subr.bf16.mxu0 0
    %1792 = vmatpush1.bf16.msra.mxu0 %v1692
    %1793 = vmatprep.subr.bf16.mxu0 0
    %1794 = vmatpush1.bf16.msra.mxu0 %v1693
    %1795 = vmatprep.subr.bf16.mxu0 0
    %1796 = vmatpush1.bf16.msra.mxu0 %v1694
    %1797 = vmatprep.subr.bf16.mxu0 0
    %1798 = vmatpush1.bf16.msra.mxu0 %v1695
    %1799 = vmatprep.subr.bf16.mxu0 0
    %1800 = vmatpush1.bf16.msra.mxu0 %v1696
    %1801 = vmatprep.mubr.bf16.mxu0 %v1463
    %1802 = vmatmul.mubr.bf16.gmra.mrb[0].mxu0 %v1462
    %v1803 = vpop.f32.mrb[0].mxu0
    %v1804 = vadd.f32 %v1764, %v1803
    %v1805 = vpop.f32.mrb[0].mxu0
    %v1806 = vpop.f32.mrb[0].mxu0
    %v1807 = vpop.f32.mrb[0].mxu0
    %1808 = vdwg.mxu0
    %v1809 = vrot.slane %v1804, 4
    %v1810 = vadd.f32 %v1804, %v1809
    %v1811 = vrot.slane %v1810, 2
    %v1812 = vadd.f32 %v1810, %v1811
    %v1813 = vrot.slane %v1812, 1
    %v1814 = vadd.f32 %v1812, %v1813
    %v1815 = vrcp.pop 8.0
    %v1816 = vmul.f32 %v1814, %v1815
    %v1817 = vsub.f32 %v1804, %v1816
    %v1818 = vmul.f32 %v1817, %v1817
    %v1819 = vrot.slane %v1818, 4
    %v1820 = vadd.f32 %v1818, %v1819
    %v1821 = vrot.slane %v1820, 2
    %v1822 = vadd.f32 %v1820, %v1821
    %v1823 = vrot.slane %v1822, 1
    %v1824 = vadd.f32 %v1822, %v1823
    %v1825 = vmul.f32 %v1824, %v1815
    %v1826 = vld [vmem:[%s3] sm:$0x1]
    %v1828 = vlaneseq
    %v1829 = vshrl.u32 %v1828, 7
    %v1830 = vsub.s32 0, %v1829
    %v1831 = vrot.slane %v1826, %v1830
    %v1833 = vmul.f32 %v1831, %v1817
    %v1834 = vadd.f32 %v1825, 1e-05
    %v1835 = vrsqrt.pop %v1834
    %v1836 = vmul.f32 %v1833, %v1835
    %v1837 = vld [vmem:[%s4] sm:$0x1]
    %v1839 = vlaneseq
    %v1840 = vshrl.u32 %v1839, 7
    %v1841 = vsub.s32 0, %v1840
    %v1842 = vrot.slane %v1837, %v1841
    %v1844 = vadd.f32 %v1836, %v1842
    %1845 = vmatprep.subr.bf16.mxu0 %v1461
    %1846 = vmatpush1.bf16.xpose.msra.mxu0 %v1460
    %1847 = vmatprep.subr.bf16.mxu0 0
    %1848 = vmatpush1.bf16.xpose.msra.mxu0 0
    %1849 = vmatprep.subr.bf16.mxu0 0
    %1850 = vmatpush1.bf16.xpose.msra.mxu0 0
    %1851 = vmatprep.subr.bf16.mxu0 0
    %1852 = vmatpush1.bf16.xpose.msra.mxu0 0
    %1853 = vmatprep.subr.bf16.mxu0 0
    %1854 = vmatpush1.bf16.xpose.msra.mxu0 0
    %1855 = vmatprep.subr.bf16.mxu0 0
    %1856 = vmatpush1.bf16.xpose.msra.mxu0 0
    %1857 = vmatprep.subr.bf16.mxu0 0
    %1858 = vmatpush1.bf16.xpose.msra.mxu0 0
    %1859 = vmatprep.subr.bf16.mxu0 0
    %1860 = vmatpush1.bf16.xpose.msra.mxu0 0
    %1861 = vmatprep.subr.bf16.mxu0 0
    %1862 = vmatpush1.bf16.xpose.msra.mxu0 0
    %1863 = vmatprep.subr.bf16.mxu0 0
    %1864 = vmatpush1.bf16.xpose.msra.mxu0 0
    %1865 = vmatprep.subr.bf16.mxu0 0
    %1866 = vmatpush1.bf16.xpose.msra.mxu0 0
    %1867 = vmatprep.subr.bf16.mxu0 0
    %1868 = vmatpush1.bf16.xpose.msra.mxu0 0
    %1869 = vmatprep.subr.bf16.mxu0 0
    %1870 = vmatpush1.bf16.xpose.msra.mxu0 0
    %1871 = vmatprep.subr.bf16.mxu0 0
    %1872 = vmatpush1.bf16.xpose.msra.mxu0 0
    %1873 = vmatprep.subr.bf16.mxu0 0
    %1874 = vmatpush1.bf16.xpose.msra.mxu0 0
    %1875 = vmatprep.subr.bf16.mxu0 0
    %1876 = vmatpush1.bf16.xpose.msra.mxu0 0
    %1877 = vmatprep.mubr.bf16.mxu0 %v1461
    %1878 = vmatmul.mubr.bf16.gmra.mrb[0].mxu0 %v1460
    %v1879 = vpop.f32.mrb[0].mxu0
    %v1880 = vadd.f32 0.0, %v1879
    %v1881 = vpop.f32.mrb[0].mxu0
    %v1882 = vpop.f32.mrb[0].mxu0
    %v1883 = vpop.f32.mrb[0].mxu0
    %1884 = vdwg.mxu0
    %1885 = vmatprep.subr.bf16.mxu0 %v1463
    %1886 = vmatpush1.bf16.xpose.msra.mxu0 %v1462
    %1887 = vmatprep.subr.bf16.mxu0 0
    %1888 = vmatpush1.bf16.xpose.msra.mxu0 0
    %1889 = vmatprep.subr.bf16.mxu0 0
    %1890 = vmatpush1.bf16.xpose.msra.mxu0 0
    %1891 = vmatprep.subr.bf16.mxu0 0
    %1892 = vmatpush1.bf16.xpose.msra.mxu0 0
    %1893 = vmatprep.subr.bf16.mxu0 0
    %1894 = vmatpush1.bf16.xpose.msra.mxu0 0
    %1895 = vmatprep.subr.bf16.mxu0 0
    %1896 = vmatpush1.bf16.xpose.msra.mxu0 0
    %1897 = vmatprep.subr.bf16.mxu0 0
    %1898 = vmatpush1.bf16.xpose.msra.mxu0 0
    %1899 = vmatprep.subr.bf16.mxu0 0
    %1900 = vmatpush1.bf16.xpose.msra.mxu0 0
    %1901 = vmatprep.subr.bf16.mxu0 0
    %1902 = vmatpush1.bf16.xpose.msra.mxu0 0
    %1903 = vmatprep.subr.bf16.mxu0 0
    %1904 = vmatpush1.bf16.xpose.msra.mxu0 0
    %1905 = vmatprep.subr.bf16.mxu0 0
    %1906 = vmatpush1.bf16.xpose.msra.mxu0 0
    %1907 = vmatprep.subr.bf16.mxu0 0
    %1908 = vmatpush1.bf16.xpose.msra.mxu0 0
    %1909 = vmatprep.subr.bf16.mxu0 0
    %1910 = vmatpush1.bf16.xpose.msra.mxu0 0
    %1911 = vmatprep.subr.bf16.mxu0 0
    %1912 = vmatpush1.bf16.xpose.msra.mxu0 0
    %1913 = vmatprep.subr.bf16.mxu0 0
    %1914 = vmatpush1.bf16.xpose.msra.mxu0 0
    %1915 = vmatprep.subr.bf16.mxu0 0
    %1916 = vmatpush1.bf16.xpose.msra.mxu0 0
    %1917 = vmatprep.mubr.bf16.mxu0 %v1463
    %1918 = vmatmul.mubr.bf16.gmra.mrb[0].mxu0 %v1462
    %v1919 = vpop.f32.mrb[0].mxu0
    %v1920 = vadd.f32 %v1880, %v1919
    %v1921 = vpop.f32.mrb[0].mxu0
    %v1922 = vpop.f32.mrb[0].mxu0
    %v1923 = vpop.f32.mrb[0].mxu0
    %1924 = vdwg.mxu0
    %v1925 = vlaneseq
    %v1926 = vshrl.u32 %v1925, 7
    %vm1927 = vcmp.eq.s32.totalorder %v1926, %v1465
    %v1928 = vsel %vm1927, %v1920, 0.0
    %vm1929 = vcmask 64512
    %v1930 = vsel %vm1929, %v1928, 0.0
    %1931 = vadd.xlane.f32.xlu0 %v1930
    %v1932 = vpop.xlane.xlu0 %1931
    %1933 = vxpose.xlu0.b32.start [1/16] %v1932, 128
    %1934 = vxpose.xlu0.b32.cont [2/16] 0.0, 128
    %1935 = vxpose.xlu0.b32.cont [3/16] 0.0, 128
    %1936 = vxpose.xlu0.b32.cont [4/16] 0.0, 128
    %1937 = vxpose.xlu0.b32.cont [5/16] 0.0, 128
    %1938 = vxpose.xlu0.b32.cont [6/16] 0.0, 128
    %1939 = vxpose.xlu0.b32.cont [7/16] 0.0, 128
    %1940 = vxpose.xlu0.b32.cont [8/16] 0.0, 128
    %1941 = vxpose.xlu0.b32.cont [9/16] 0.0, 128
    %1942 = vxpose.xlu0.b32.cont [10/16] 0.0, 128
    %1943 = vxpose.xlu0.b32.cont [11/16] 0.0, 128
    %1944 = vxpose.xlu0.b32.cont [12/16] 0.0, 128
    %1945 = vxpose.xlu0.b32.cont [13/16] 0.0, 128
    %1946 = vxpose.xlu0.b32.cont [14/16] 0.0, 128
    %1947 = vxpose.xlu0.b32.cont [15/16] 0.0, 128
    %1948 = vxpose.xlu0.b32.end [16/16] 0.0, 128
    %v1949 = vpop.trf.xlu0
    %v1950 = vpop.trf.xlu0
    %v1951 = vpop.trf.xlu0
    %v1952 = vpop.trf.xlu0
    %v1953 = vpop.trf.xlu0
    %v1954 = vpop.trf.xlu0
    %v1955 = vpop.trf.xlu0
    %v1956 = vpop.trf.xlu0
    %v1957 = vpop.trf.xlu0
    %v1958 = vpop.trf.xlu0
    %v1959 = vpop.trf.xlu0
    %v1960 = vpop.trf.xlu0
    %v1961 = vpop.trf.xlu0
    %v1962 = vpop.trf.xlu0
    %v1963 = vpop.trf.xlu0
    %v1964 = vpop.trf.xlu0
    %v1965 = vrsqrt.pop %v1932
    %v1966 = vmul.f32 %v1920, %v1965
    %v1967 = vrsqrt.pop %v1949
    %v1968 = vlaneseq
    %v1969 = vshrl.u32 %v1968, 7
    %v1970 = vsub.s32 0, %v1969
    %v1971 = vrot.slane %v1967, %v1970
    %v1972 = vmul.f32 %v1966, %v1971
    %v1973 = vrot.slane %v1472, 4
    %v1974 = vadd.f32 %v1472, %v1973
    %v1975 = vrot.slane %v1974, 2
    %v1976 = vadd.f32 %v1974, %v1975
    %v1977 = vrot.slane %v1976, 1
    %v1978 = vadd.f32 %v1976, %v1977
    %v1979 = vmax.f32 %v1978, 1.0
    %v1981 = vsel %vm1929, %v1972, 0
    %1983 = vmatprep.subr.mxu0 0.0
    %1984 = vmatpush1.msra.mxu0 %v1472
    %1985 = vmatprep.subr.mxu0 0.0
    %1986 = vmatpush1.msra.mxu0 0.0
    %1987 = vmatprep.subr.mxu0 0.0
    %1988 = vmatpush1.msra.mxu0 0.0
    %1989 = vmatprep.subr.mxu0 0.0
    %1990 = vmatpush1.msra.mxu0 0.0
    %1991 = vmatprep.subr.mxu0 0.0
    %1992 = vmatpush1.msra.mxu0 0.0
    %1993 = vmatprep.subr.mxu0 0.0
    %1994 = vmatpush1.msra.mxu0 0.0
    %1995 = vmatprep.subr.mxu0 0.0
    %1996 = vmatpush1.msra.mxu0 0.0
    %1997 = vmatprep.subr.mxu0 0.0
    %1998 = vmatpush1.msra.mxu0 0.0
    %1999 = vmatprep.subr.mxu0 0.0
    %2000 = vmatpush1.msra.mxu0 0.0
    %2001 = vmatprep.subr.mxu0 0.0
    %2002 = vmatpush1.msra.mxu0 0.0
    %2003 = vmatprep.subr.mxu0 0.0
    %2004 = vmatpush1.msra.mxu0 0.0
    %2005 = vmatprep.subr.mxu0 0.0
    %2006 = vmatpush1.msra.mxu0 0.0
    %2007 = vmatprep.subr.mxu0 0.0
    %2008 = vmatpush1.msra.mxu0 0.0
    %2009 = vmatprep.subr.mxu0 0.0
    %2010 = vmatpush1.msra.mxu0 0.0
    %2011 = vmatprep.subr.mxu0 0.0
    %2012 = vmatpush1.msra.mxu0 0.0
    %2013 = vmatprep.subr.mxu0 0.0
    %2014 = vmatpush1.msra.mxu0 0.0
    %2015 = vmatprep.subr.mxu0 0.0
    %2016 = vmatpush1.msra.mxu0 0.0
    %2017 = vmatprep.subr.mxu0 0.0
    %2018 = vmatpush1.msra.mxu0 0.0
    %2019 = vmatprep.subr.mxu0 0.0
    %2020 = vmatpush1.msra.mxu0 0.0
    %2021 = vmatprep.subr.mxu0 0.0
    %2022 = vmatpush1.msra.mxu0 0.0
    %2023 = vmatprep.subr.mxu0 0.0
    %2024 = vmatpush1.msra.mxu0 0.0
    %2025 = vmatprep.subr.mxu0 0.0
    %2026 = vmatpush1.msra.mxu0 0.0
    %2027 = vmatprep.subr.mxu0 0.0
    %2028 = vmatpush1.msra.mxu0 0.0
    %2029 = vmatprep.subr.mxu0 0.0
    %2030 = vmatpush1.msra.mxu0 0.0
    %2031 = vmatprep.subr.mxu0 0.0
    %2032 = vmatpush1.msra.mxu0 0.0
    %2033 = vmatprep.subr.mxu0 0.0
    %2034 = vmatpush1.msra.mxu0 0.0
    %2035 = vmatprep.subr.mxu0 0.0
    %2036 = vmatpush1.msra.mxu0 0.0
    %2037 = vmatprep.subr.mxu0 0.0
    %2038 = vmatpush1.msra.mxu0 0.0
    %2039 = vmatprep.subr.mxu0 0.0
    %2040 = vmatpush1.msra.mxu0 0.0
    %2041 = vmatprep.subr.mxu0 0.0
    %2042 = vmatpush1.msra.mxu0 0.0
    %2043 = vmatprep.subr.mxu0 0.0
    %2044 = vmatpush1.msra.mxu0 0.0
    %2045 = vmatprep.subr.mxu0 0.0
    %2046 = vmatpush1.msra.mxu0 0.0
    %2047 = vmatprep.mubr.f32.mxu0 0.0
    %2048 = vmatmul.mubr.f32.gmra.mrb[0].mxu0 %v1981
    %v2049 = vpop.f32.mrb[0].mxu0
    %v2050 = vadd.f32 0.0, %v2049
    %v2051 = vpop.f32.mrb[0].mxu0
    %2052 = vdwg.mxu0
    %v2053 = vrcp.pop %v1979
    %v2054 = vmul.f32 %v2050, %v2053
    %v2055 = vlaneseq
    %v2056 = vshrl.u32 %v2055, 7
    %v2057 = vsub.s32 0, %v2056
    %v2058 = vrot.slane %v1949, %v2057
    %v2059 = vadd.f32 %v1932, %v2058
    %v2060 = vmul.f32 %v1920, 2.0
    %v2061 = vsub.f32 %v2059, %v2060
    %v2062 = vmax.f32 %v2061, 0.0
    %v2063 = vmul.f32 %v2062, -12.5
    %v2064 = vmul.f32 %v2063, 1.442695
    %v2065 = vpow.pop %v2064
    %v2067 = vsel %vm1929, %v2065, 0
    %2069 = vmatprep.subr.mxu0 0.0
    %2070 = vmatpush1.msra.mxu0 %v1472
    %2071 = vmatprep.subr.mxu0 0.0
    %2072 = vmatpush1.msra.mxu0 0.0
    %2073 = vmatprep.subr.mxu0 0.0
    %2074 = vmatpush1.msra.mxu0 0.0
    %2075 = vmatprep.subr.mxu0 0.0
    %2076 = vmatpush1.msra.mxu0 0.0
    %2077 = vmatprep.subr.mxu0 0.0
    %2078 = vmatpush1.msra.mxu0 0.0
    %2079 = vmatprep.subr.mxu0 0.0
    %2080 = vmatpush1.msra.mxu0 0.0
    %2081 = vmatprep.subr.mxu0 0.0
    %2082 = vmatpush1.msra.mxu0 0.0
    %2083 = vmatprep.subr.mxu0 0.0
    %2084 = vmatpush1.msra.mxu0 0.0
    %2085 = vmatprep.subr.mxu0 0.0
    %2086 = vmatpush1.msra.mxu0 0.0
    %2087 = vmatprep.subr.mxu0 0.0
    %2088 = vmatpush1.msra.mxu0 0.0
    %2089 = vmatprep.subr.mxu0 0.0
    %2090 = vmatpush1.msra.mxu0 0.0
    %2091 = vmatprep.subr.mxu0 0.0
    %2092 = vmatpush1.msra.mxu0 0.0
    %2093 = vmatprep.subr.mxu0 0.0
    %2094 = vmatpush1.msra.mxu0 0.0
    %2095 = vmatprep.subr.mxu0 0.0
    %2096 = vmatpush1.msra.mxu0 0.0
    %2097 = vmatprep.subr.mxu0 0.0
    %2098 = vmatpush1.msra.mxu0 0.0
    %2099 = vmatprep.subr.mxu0 0.0
    %2100 = vmatpush1.msra.mxu0 0.0
    %2101 = vmatprep.subr.mxu0 0.0
    %2102 = vmatpush1.msra.mxu0 0.0
    %2103 = vmatprep.subr.mxu0 0.0
    %2104 = vmatpush1.msra.mxu0 0.0
    %2105 = vmatprep.subr.mxu0 0.0
    %2106 = vmatpush1.msra.mxu0 0.0
    %2107 = vmatprep.subr.mxu0 0.0
    %2108 = vmatpush1.msra.mxu0 0.0
    %2109 = vmatprep.subr.mxu0 0.0
    %2110 = vmatpush1.msra.mxu0 0.0
    %2111 = vmatprep.subr.mxu0 0.0
    %2112 = vmatpush1.msra.mxu0 0.0
    %2113 = vmatprep.subr.mxu0 0.0
    %2114 = vmatpush1.msra.mxu0 0.0
    %2115 = vmatprep.subr.mxu0 0.0
    %2116 = vmatpush1.msra.mxu0 0.0
    %2117 = vmatprep.subr.mxu0 0.0
    %2118 = vmatpush1.msra.mxu0 0.0
    %2119 = vmatprep.subr.mxu0 0.0
    %2120 = vmatpush1.msra.mxu0 0.0
    %2121 = vmatprep.subr.mxu0 0.0
    %2122 = vmatpush1.msra.mxu0 0.0
    %2123 = vmatprep.subr.mxu0 0.0
    %2124 = vmatpush1.msra.mxu0 0.0
    %2125 = vmatprep.subr.mxu0 0.0
    %2126 = vmatpush1.msra.mxu0 0.0
    %2127 = vmatprep.subr.mxu0 0.0
    %2128 = vmatpush1.msra.mxu0 0.0
    %2129 = vmatprep.subr.mxu0 0.0
    %2130 = vmatpush1.msra.mxu0 0.0
    %2131 = vmatprep.subr.mxu0 0.0
    %2132 = vmatpush1.msra.mxu0 0.0
    %2133 = vmatprep.mubr.f32.mxu0 0.0
    %2134 = vmatmul.mubr.f32.gmra.mrb[0].mxu0 %v2067
    %v2135 = vpop.f32.mrb[0].mxu0
    %v2136 = vadd.f32 0.0, %v2135
    %v2137 = vpop.f32.mrb[0].mxu0
    %2138 = vdwg.mxu0
    %v2139 = vmax.f32 %v2136, 1e-30
    %v2140 = vlog2.pop %v2139
    %v2141 = vmul.f32 %v2140, 0.6931472
    %v2142 = vlog2.pop %v1979
    %v2143 = vmul.f32 %v2142, 0.6931472
    %v2144 = vsub.f32 %v2141, %v2143
    %v2145 = vsub.f32 %v2144, -353.53568
    %vm2146 = vcmp.gt.f32.partialorder %v1472, 0.5
    %v2147 = vsel %vm2146, %v2145, 0.0
    %v2148 = vrot.slane %v2147, 4
    %v2149 = vadd.f32 %v2147, %v2148
    %v2150 = vrot.slane %v2149, 2
    %v2151 = vadd.f32 %v2149, %v2150
    %v2152 = vrot.slane %v2151, 1
    %v2153 = vadd.f32 %v2151, %v2152
    %v2154 = vadd.f32 %v2153, 1e-05
    %v2155 = vrcp.pop %v2154
    %v2156 = vmul.f32 1.0, %v2155
    %v2157 = vmul.f32 %v2054, %v1472
    %v2158 = vmul.f32 %v2157, %v2156
    %2159 = vadd.xlane.f32.xlu0 %v2158
    %v2160 = vpop.xlane.xlu0 %2159
    %v2161 = vrot.slane %v2160, 4
    %v2162 = vadd.f32 %v2160, %v2161
    %v2163 = vrot.slane %v2162, 2
    %v2164 = vadd.f32 %v2162, %v2163
    %v2165 = vrot.slane %v2164, 1
    %v2166 = vadd.f32 %v2164, %v2165
    %s2167 = vtos %v2166
    %v2168 = vsub.f32 1.0, %v1472
    %v2169 = vmul.f32 %v2054, %v2168
    %v2170 = vmul.f32 %v2169, %v2156
    %2171 = vadd.xlane.f32.xlu0 %v2170
    %v2172 = vpop.xlane.xlu0 %2171
    %v2173 = vrot.slane %v2172, 4
    %v2174 = vadd.f32 %v2172, %v2173
    %v2175 = vrot.slane %v2174, 2
    %v2176 = vadd.f32 %v2174, %v2175
    %v2177 = vrot.slane %v2176, 1
    %v2178 = vadd.f32 %v2176, %v2177
    %s2179 = vtos %v2178
    %v2180 = vrcp.pop 48.0
    %s2181 = vtos %v2180
    %s2182 = smul.f32 %s2179, %s2181
    %s2183 = sadd.f32 %s2182, 1.0
    %v2184 = vrcp.pop 7.0
    %s2185 = vtos %v2184
    %s2186 = smul.f32 %s2167, %s2185
    %s2187 = ssub.f32 1.0, %s2186
    %s2188 = sadd.f32 %s2183, %s2187
    %v2189 = vrcp.pop 2.0
    %s2190 = vtos %v2189
    %s2191 = smul.f32 %s2188, %s2190
    %vm2192 = vcmp.eq.s32.totalorder %v1926, 0
    %vm2193 = vcmp.eq.s32.totalorder %v1465, 7
    %vm2194 = vmand %vm2192, %vm2193
    %v2195 = vstv %s2191
    %v2196 = vsel %vm2194, %v2195, %v1844
    %2197 = vst [vmem:[%s6] sm:$0xff] %v2196
    // Predicated region
    $region30: #{_forward_device.1} parent=1 // pred_check
      _
    $region31: #{_forward_device.1} parent=1 // pred_check_branch
      %2199 = sbr.rel (0) target = $region33
    $region32: #{_forward_device.1} parent=1 // pred_region
      _
    $region33: #{_forward_device.1} parent=1 // pred_fallthru
      _
    // Predicated region
    $region34: #{_forward_device.1} parent=1 // pred_check
      _
    $region35: #{_forward_device.1} parent=1 // pred_check_branch
      %2201 = sbr.rel (0) target = $region37
    $region36: #{_forward_device.1} parent=1 // pred_region
      _
    $region37: #{_forward_device.1} parent=1 // pred_fallthru
      _
    %2202 = vsyncpa [#allocation3], 1

</llo_original>
